<compile_context>
chip_gen: v5e
topology: v5e:2x2
jax: 0.10.0
libtpu: 0.0.40
codegen_flags: <defaults>
</compile_context>

<pallas_src>
import jax
import jax.numpy as jnp
from jax.experimental import pallas as pl
from jax.experimental.pallas import tpu as pltpu


def _round_up(x, m):
    return ((x + m - 1) // m) * m


def _pad2d(a, rows, cols, dtype):
    out = jnp.zeros((rows, cols), dtype)
    return out.at[: a.shape[0], : a.shape[1]].set(a.astype(dtype))


def _default_tile_b():
    """Per-generation batch tile default: 128 (v5e MXU geometry), 512 (v6e), else 256."""
    try:
        kind = jax.devices()[0].device_kind.lower()
    except Exception:
        return 256
    if "v5" in kind:
        return 128
    if "v6" in kind:
        return 512
    return 256


def vae_forward(x, eps, params, *, tile_b=None,
                matmul_dtype=jnp.bfloat16, out_dtype=jnp.float32):
    """VAE forward. params: un-padded (in, out) weights and (1, out) biases.

    matmul_dtype: MXU operand dtype (bf16 default; f32 accumulation always).
    out_dtype:    dtype of the packed [recon | mu | logvar] output slab.
    """
    f32 = jnp.float32
    md = jnp.dtype(matmul_dtype)
    od = jnp.dtype(out_dtype)

    B, input_dim = x.shape
    hidden_dim = params["ew1"].shape[1]
    latent_dim = params["wmu"].shape[1]

    # ---- lane-dense padding: every feature axis -> multiple of 128 ----
    pad_in = _round_up(input_dim, 128)
    pad_h = _round_up(hidden_dim, 128)
    pad_lat = _round_up(latent_dim, 128)
    head_w = 2 * pad_lat                 # fused [mu | logvar] head width
    out_w = pad_in + head_w              # packed [recon | mu | logvar] output slab
    pad_max = max(pad_h, pad_in, head_w)

    # ---- batch tiling ----
    # Multiples of 16 (bf16 sublane packing); guarantee >=2 grid steps when the batch
    # allows it so the "parallel" axis shards across both v7x TensorCores.
    if tile_b is None:
        tile_b = _default_tile_b()
    tb = max(16, min(int(tile_b), _round_up(B, 16)))
    tb = _round_up(tb, 16)
    if B > 16 and tb >= _round_up(B, 16):
        tb = _round_up((B + 1) // 2, 16)
    B_pad = _round_up(B, tb)
    grid = (B_pad // tb,)

    # ---- host-side packing: zero-padded bf16 weight slabs + one f32 bias slab ----
    ew1 = _pad2d(params["ew1"], pad_in, pad_h, md)
    ew2 = _pad2d(params["ew2"], pad_h, pad_h, md)
    whead = (jnp.zeros((pad_h, head_w), f32)
             .at[:hidden_dim, :latent_dim].set(params["wmu"])
             .at[:hidden_dim, pad_lat:pad_lat + latent_dim].set(params["wsg"])
             ).astype(md)
    dw1 = _pad2d(params["dw1"], pad_lat, pad_h, md)
    dw2 = _pad2d(params["dw2"], pad_h, pad_h, md)
    dw3 = _pad2d(params["dw3"], pad_h, pad_in, md)

    bias = (jnp.zeros((8, pad_max), f32)
            .at[0, :hidden_dim].set(params["eb1"].reshape(-1))
            .at[1, :hidden_dim].set(params["eb2"].reshape(-1))
            .at[2, :latent_dim].set(params["bmu"].reshape(-1))
            .at[2, pad_lat:pad_lat + latent_dim].set(params["bsg"].reshape(-1))
            .at[3, :hidden_dim].set(params["db1"].reshape(-1))
            .at[4, :hidden_dim].set(params["db2"].reshape(-1))
            .at[5, :input_dim].set(params["db3"].reshape(-1)))

    # x cast to the matmul dtype host-side (half the x DMA, no per-step astype in-kernel).
    x_p = jnp.zeros((B_pad, pad_in), md).at[:B, :input_dim].set(x.astype(md))
    # eps stays f32: it only feeds the f32 elementwise reparameterization.
    # TODO(synk): eps could be drawn in-kernel via pltpu.prng_seed/stateful_normal to
    # drop this DMA stream, at the cost of bit-exact checkability vs. the host reference.
    eps_p = jnp.zeros((B_pad, pad_lat), f32).at[:B, :latent_dim].set(eps.astype(f32))

    # ---- kernel (closure over the padded dims) ----
    def kernel(x_ref, eps_ref, ew1_ref, ew2_ref, whead_ref,
               dw1_ref, dw2_ref, dw3_ref, bias_ref, out_ref):
        b = bias_ref[...]                                     # (8, pad_max), f32

        # encoder: Linear + ReLU, Linear + ReLU   (bf16 operands, f32 accumulation)
        h = jnp.dot(x_ref[...], ew1_ref[...],
                    preferred_element_type=f32) + b[0:1, :pad_h]
        h = jnp.maximum(h, 0.0)
        h = jnp.dot(h.astype(md), ew2_ref[...],
                    preferred_element_type=f32) + b[1:2, :pad_h]
        h = jnp.maximum(h, 0.0)

        # fused latent heads: one MXU push producing [mu | logvar]
        head = jnp.dot(h.astype(md), whead_ref[...],
                       preferred_element_type=f32) + b[2:3, :head_w]
        mu = head[:, :pad_lat]
        logvar = head[:, pad_lat:]

        # reparameterize: z = mu + eps * exp(0.5 * logvar)   (f32 elementwise)
        z = mu + eps_ref[...] * jnp.exp(0.5 * logvar)

        # decoder: Linear + ReLU, Linear + ReLU, Linear
        d = jnp.dot(z.astype(md), dw1_ref[...],
                    preferred_element_type=f32) + b[3:4, :pad_h]
        d = jnp.maximum(d, 0.0)
        d = jnp.dot(d.astype(md), dw2_ref[...],
                    preferred_element_type=f32) + b[4:5, :pad_h]
        d = jnp.maximum(d, 0.0)
        recon = jnp.dot(d.astype(md), dw3_ref[...],
                        preferred_element_type=f32) + b[5:6, :pad_in]

        # lane-dense packed output slab: two 128-aligned unmasked stores
        out_ref[:, :pad_in] = recon.astype(out_ref.dtype)
        out_ref[:, pad_in:] = head.astype(out_ref.dtype)      # [mu | logvar] in one store

    # ---- scheduling hints ----
    flops = 2 * B_pad * (pad_in * pad_h + pad_h * pad_h + pad_h * head_w
                         + pad_lat * pad_h + pad_h * pad_h + pad_h * pad_in)
    weights = (ew1, ew2, whead, dw1, dw2, dw3, bias)
    weight_bytes = sum(int(w.size) * w.dtype.itemsize for w in weights)
    io_bytes = (int(x_p.size) * x_p.dtype.itemsize
                + int(eps_p.size) * eps_p.dtype.itemsize
                + weight_bytes
                + B_pad * out_w * od.itemsize)
    cost = pl.CostEstimate(flops=int(flops),
                           transcendentals=int(B_pad * pad_lat),
                           bytes_accessed=int(io_bytes))

    def _call(weight_buffer_count):
        if weight_buffer_count == 2:
            def resident(arr):
                # full-array block, constant index_map -> VMEM-resident across steps
                return pl.BlockSpec(arr.shape, lambda i: (0, 0))
        else:
            def resident(arr):
                # constant index_map: never re-DMAs after step 0, so a single buffer
                # is enough -> halves resident weight VMEM vs. the default pipeline.
                return pl.BlockSpec(arr.shape, lambda i: (0, 0),
                                    pipeline_mode=pl.Buffered(weight_buffer_count))

        in_specs = [
            pl.BlockSpec((tb, pad_in), lambda i: (i, 0)),      # x batch tile (bf16)
            pl.BlockSpec((tb, pad_lat), lambda i: (i, 0)),     # eps batch tile (f32)
            resident(ew1), resident(ew2), resident(whead),
            resident(dw1), resident(dw2), resident(dw3),
            resident(bias),
        ]
        out_spec = pl.BlockSpec((tb, out_w), lambda i: (i, 0))

        # explicit VMEM budget: weights (x buffer count) + double-buffered activation
        # tiles + slack for intermediates / internal scratch; capped at 64 MiB (v7x).
        act_bytes = 2 * (tb * pad_in * md.itemsize
                         + tb * pad_lat * 4
                         + tb * out_w * od.itemsize)
        vmem_limit = weight_bytes * weight_buffer_count + act_bytes + (16 << 20)
        vmem_limit = int(min(vmem_limit, 64 << 20))

        return pl.pallas_call(
            kernel,
            out_shape=jax.ShapeDtypeStruct((B_pad, out_w), od),
            grid=grid,
            in_specs=in_specs,
            out_specs=out_spec,
            compiler_params=pltpu.CompilerParams(
                # batch tiles are independent -> shard across TensorCores (v7x megacore)
                dimension_semantics=("parallel",),
                vmem_limit_bytes=vmem_limit,
            ),
            cost_estimate=cost,
        )(x_p, eps_p, ew1, ew2, whead, dw1, dw2, dw3, bias)

    try:
        out = _call(1)       # single-buffered resident weights
    except Exception:        # pragma: no cover - jax build without Buffered(1) support
        out = _call(2)       # fall back to default double-buffering (still correct)

    # unpack + strip padding in the JAX wrapper
    recon = out[:B, :input_dim]
    mu = out[:B, pad_in:pad_in + latent_dim]
    logvar = out[:B, pad_in + pad_lat:pad_in + pad_lat + latent_dim]
    return recon, mu, logvar


def init_params(key, input_dim, hidden_dim, latent_dim):
    """Deterministic synthetic parameters, pre-transposed to (in, out) like x @ W + b."""
    def linear(k, fan_in, fan_out):
        kw, kb = jax.random.split(k)
        bound = 1.0 / jnp.sqrt(fan_in)
        w = jax.random.uniform(kw, (fan_in, fan_out), jnp.float32, -bound, bound)
        b = jax.random.uniform(kb, (1, fan_out), jnp.float32, -bound, bound)
        return w, b

    keys = jax.random.split(key, 7)
    ew1, eb1 = linear(keys[0], input_dim, hidden_dim)
    ew2, eb2 = linear(keys[1], hidden_dim, hidden_dim)
    wmu, bmu = linear(keys[2], hidden_dim, latent_dim)
    wsg, bsg = linear(keys[3], hidden_dim, latent_dim)
    dw1, db1 = linear(keys[4], latent_dim, hidden_dim)
    dw2, db2 = linear(keys[5], hidden_dim, hidden_dim)
    dw3, db3 = linear(keys[6], hidden_dim, input_dim)
    return dict(
        ew1=ew1, eb1=eb1, ew2=ew2, eb2=eb2,
        wmu=wmu, bmu=bmu, wsg=wsg, bsg=bsg,
        dw1=dw1, db1=db1, dw2=dw2, db2=db2, dw3=dw3, db3=db3,
    )


def vae_forward_ref(x, eps, p, matmul_dtype=jnp.float32):
    """Pure-JAX reference (matches the PyTorch VAE.forward with externally-fed eps).

    matmul_dtype mirrors the kernel's MXU operand dtype so the numerical check is
    precision-matched (bf16 operands, f32 accumulation, f32 elementwise)."""
    md = jnp.dtype(matmul_dtype)
    f32 = jnp.float32

    def mm(a, w):
        return jnp.dot(a.astype(md), w.astype(md), preferred_element_type=f32)

    h = jnp.maximum(mm(x, p["ew1"]) + p["eb1"], 0.0)
    h = jnp.maximum(mm(h, p["ew2"]) + p["eb2"], 0.0)
    mu = mm(h, p["wmu"]) + p["bmu"]
    logvar = mm(h, p["wsg"]) + p["bsg"]
    z = mu + eps * jnp.exp(0.5 * logvar)
    d = jnp.maximum(mm(z, p["dw1"]) + p["db1"], 0.0)
    d = jnp.maximum(mm(d, p["dw2"]) + p["db2"], 0.0)
    d = mm(d, p["dw3"]) + p["db3"]
    return d, mu, logvar


if __name__ == "__main__":
    key = jax.random.PRNGKey(0)
    k_x, k_eps, k_p = jax.random.split(key, 3)

    # small shapes consistent with the module (2 hidden layers, mu/sigma heads);
    # B=96 so the batch grid has >=2 steps and exercises the tiling/megacore path.
    B, input_dim, hidden_dim, latent_dim = 96, 96, 64, 16

    x = jax.random.normal(k_x, (B, input_dim), jnp.float32)
    # eps is the torch.randn_like noise of reparameterize(), generated deterministically
    # on the host and fed to the kernel so the result is checkable against the reference.
    eps = jax.random.normal(k_eps, (B, latent_dim), jnp.float32)
    params = init_params(k_p, input_dim, hidden_dim, latent_dim)

    recon, mu, logvar = vae_forward(x, eps, params)          # bf16 MXU operands (default)
    jax.block_until_ready((recon, mu, logvar))

    # precision-matched reference (bf16 operands, f32 accumulation, f32 elementwise)
    r_ref, mu_ref, lv_ref = vae_forward_ref(x, eps, params, matmul_dtype=jnp.bfloat16)
    assert jnp.allclose(recon, r_ref, atol=1e-2, rtol=1e-2), "recon mismatch"
    assert jnp.allclose(mu, mu_ref, atol=1e-2, rtol=1e-2), "mu mismatch"
    assert jnp.allclose(logvar, lv_ref, atol=1e-2, rtol=1e-2), "logvar mismatch"

    print("KERNEL_OK")
</pallas_src>

<mosaic_0001>
module attributes {stable_mosaic.version = 11 : i64} {
  func.func @kernel(%arg0: i32, %arg1: memref<48x128xbf16, #tpu.memory_space<vmem>>, %arg2: memref<48x128xf32, #tpu.memory_space<vmem>>, %arg3: memref<128x128xbf16, #tpu.memory_space<vmem>>, %arg4: memref<128x128xbf16, #tpu.memory_space<vmem>>, %arg5: memref<128x256xbf16, #tpu.memory_space<vmem>>, %arg6: memref<128x128xbf16, #tpu.memory_space<vmem>>, %arg7: memref<128x128xbf16, #tpu.memory_space<vmem>>, %arg8: memref<128x128xbf16, #tpu.memory_space<vmem>>, %arg9: memref<8x256xf32, #tpu.memory_space<vmem>>, %arg10: memref<48x384xf32, #tpu.memory_space<vmem>>) attributes {dimension_semantics = [#tpu.dimension_semantics<parallel>], iteration_bounds = array<i64: 2>, scalar_prefetch = 0 : i64, scratch_operands = 0 : i64, tpu.core_type = #tpu.core_type<tc>, window_params = [{transform_indices = @transform_0, window_bounds = array<i64: 48, 128>}, {transform_indices = @transform_1, window_bounds = array<i64: 48, 128>}, {pipeline_mode = #tpu.pipeline_mode<synchronous>, transform_indices = @transform_2, window_bounds = array<i64: 128, 128>}, {pipeline_mode = #tpu.pipeline_mode<synchronous>, transform_indices = @transform_3, window_bounds = array<i64: 128, 128>}, {pipeline_mode = #tpu.pipeline_mode<synchronous>, transform_indices = @transform_4, window_bounds = array<i64: 128, 256>}, {pipeline_mode = #tpu.pipeline_mode<synchronous>, transform_indices = @transform_5, window_bounds = array<i64: 128, 128>}, {pipeline_mode = #tpu.pipeline_mode<synchronous>, transform_indices = @transform_6, window_bounds = array<i64: 128, 128>}, {pipeline_mode = #tpu.pipeline_mode<synchronous>, transform_indices = @transform_7, window_bounds = array<i64: 128, 128>}, {pipeline_mode = #tpu.pipeline_mode<synchronous>, transform_indices = @transform_8, window_bounds = array<i64: 8, 256>}, {transform_indices = @transform_9, window_bounds = array<i64: 48, 384>}]} {
    %c0 = arith.constant 0 : index
    %c0_0 = arith.constant 0 : index
    %0 = vector.load %arg9[%c0, %c0_0] : memref<8x256xf32, #tpu.memory_space<vmem>>, vector<8x256xf32>
    %c0_1 = arith.constant 0 : index
    %c0_2 = arith.constant 0 : index
    %1 = vector.load %arg1[%c0_1, %c0_2] : memref<48x128xbf16, #tpu.memory_space<vmem>>, vector<48x128xbf16>
    %c0_3 = arith.constant 0 : index
    %c0_4 = arith.constant 0 : index
    %2 = vector.load %arg3[%c0_3, %c0_4] : memref<128x128xbf16, #tpu.memory_space<vmem>>, vector<128x128xbf16>
    %cst = arith.constant dense<0.000000e+00> : vector<48x128xf32>
    %3 = tpu.matmul %1, %2, %cst {dimension_numbers = #tpu.dot_dimension_numbers<[1], [0], [0], [1], [0, 0, 1, 1], [], []>} : vector<48x128xbf16>, vector<128x128xbf16>, vector<48x128xf32> -> vector<48x128xf32>
    %4 = vector.extract_strided_slice %0 {offsets = [0, 0], sizes = [1, 128], strides = [1, 1]} : vector<8x256xf32> to vector<1x128xf32>
    %5 = vector.broadcast %4 : vector<1x128xf32> to vector<48x128xf32>
    %6 = arith.addf %3, %5 : vector<48x128xf32>
    %cst_5 = arith.constant 0.000000e+00 : f32
    %7 = vector.broadcast %cst_5 : f32 to vector<48x128xf32>
    %8 = arith.maximumf %6, %7 : vector<48x128xf32>
    %9 = arith.truncf %8 : vector<48x128xf32> to vector<48x128xbf16>
    %c0_6 = arith.constant 0 : index
    %c0_7 = arith.constant 0 : index
    %10 = vector.load %arg4[%c0_6, %c0_7] : memref<128x128xbf16, #tpu.memory_space<vmem>>, vector<128x128xbf16>
    %cst_8 = arith.constant dense<0.000000e+00> : vector<48x128xf32>
    %11 = tpu.matmul %9, %10, %cst_8 {dimension_numbers = #tpu.dot_dimension_numbers<[1], [0], [0], [1], [0, 0, 1, 1], [], []>} : vector<48x128xbf16>, vector<128x128xbf16>, vector<48x128xf32> -> vector<48x128xf32>
    %12 = vector.extract_strided_slice %0 {offsets = [1, 0], sizes = [1, 128], strides = [1, 1]} : vector<8x256xf32> to vector<1x128xf32>
    %13 = vector.broadcast %12 : vector<1x128xf32> to vector<48x128xf32>
    %14 = arith.addf %11, %13 : vector<48x128xf32>
    %cst_9 = arith.constant 0.000000e+00 : f32
    %15 = vector.broadcast %cst_9 : f32 to vector<48x128xf32>
    %16 = arith.maximumf %14, %15 : vector<48x128xf32>
    %17 = arith.truncf %16 : vector<48x128xf32> to vector<48x128xbf16>
    %c0_10 = arith.constant 0 : index
    %c0_11 = arith.constant 0 : index
    %18 = vector.load %arg5[%c0_10, %c0_11] : memref<128x256xbf16, #tpu.memory_space<vmem>>, vector<128x256xbf16>
    %cst_12 = arith.constant dense<0.000000e+00> : vector<48x256xf32>
    %19 = tpu.matmul %17, %18, %cst_12 {dimension_numbers = #tpu.dot_dimension_numbers<[1], [0], [0], [1], [0, 0, 1, 1], [], []>} : vector<48x128xbf16>, vector<128x256xbf16>, vector<48x256xf32> -> vector<48x256xf32>
    %20 = vector.extract_strided_slice %0 {offsets = [2, 0], sizes = [1, 256], strides = [1, 1]} : vector<8x256xf32> to vector<1x256xf32>
    %21 = vector.broadcast %20 : vector<1x256xf32> to vector<48x256xf32>
    %22 = arith.addf %19, %21 : vector<48x256xf32>
    %23 = vector.extract_strided_slice %22 {offsets = [0, 0], sizes = [48, 128], strides = [1, 1]} : vector<48x256xf32> to vector<48x128xf32>
    %24 = vector.extract_strided_slice %22 {offsets = [0, 128], sizes = [48, 128], strides = [1, 1]} : vector<48x256xf32> to vector<48x128xf32>
    %c0_13 = arith.constant 0 : index
    %c0_14 = arith.constant 0 : index
    %25 = vector.load %arg2[%c0_13, %c0_14] : memref<48x128xf32, #tpu.memory_space<vmem>>, vector<48x128xf32>
    %cst_15 = arith.constant 5.000000e-01 : f32
    %26 = vector.broadcast %cst_15 : f32 to vector<48x128xf32>
    %27 = arith.mulf %26, %24 : vector<48x128xf32>
    %28 = math.exp %27 : vector<48x128xf32>
    %29 = arith.mulf %25, %28 : vector<48x128xf32>
    %30 = arith.addf %23, %29 : vector<48x128xf32>
    %31 = arith.truncf %30 : vector<48x128xf32> to vector<48x128xbf16>
    %c0_16 = arith.constant 0 : index
    %c0_17 = arith.constant 0 : index
    %32 = vector.load %arg6[%c0_16, %c0_17] : memref<128x128xbf16, #tpu.memory_space<vmem>>, vector<128x128xbf16>
    %cst_18 = arith.constant dense<0.000000e+00> : vector<48x128xf32>
    %33 = tpu.matmul %31, %32, %cst_18 {dimension_numbers = #tpu.dot_dimension_numbers<[1], [0], [0], [1], [0, 0, 1, 1], [], []>} : vector<48x128xbf16>, vector<128x128xbf16>, vector<48x128xf32> -> vector<48x128xf32>
    %34 = vector.extract_strided_slice %0 {offsets = [3, 0], sizes = [1, 128], strides = [1, 1]} : vector<8x256xf32> to vector<1x128xf32>
    %35 = vector.broadcast %34 : vector<1x128xf32> to vector<48x128xf32>
    %36 = arith.addf %33, %35 : vector<48x128xf32>
    %cst_19 = arith.constant 0.000000e+00 : f32
    %37 = vector.broadcast %cst_19 : f32 to vector<48x128xf32>
    %38 = arith.maximumf %36, %37 : vector<48x128xf32>
    %39 = arith.truncf %38 : vector<48x128xf32> to vector<48x128xbf16>
    %c0_20 = arith.constant 0 : index
    %c0_21 = arith.constant 0 : index
    %40 = vector.load %arg7[%c0_20, %c0_21] : memref<128x128xbf16, #tpu.memory_space<vmem>>, vector<128x128xbf16>
    %cst_22 = arith.constant dense<0.000000e+00> : vector<48x128xf32>
    %41 = tpu.matmul %39, %40, %cst_22 {dimension_numbers = #tpu.dot_dimension_numbers<[1], [0], [0], [1], [0, 0, 1, 1], [], []>} : vector<48x128xbf16>, vector<128x128xbf16>, vector<48x128xf32> -> vector<48x128xf32>
    %42 = vector.extract_strided_slice %0 {offsets = [4, 0], sizes = [1, 128], strides = [1, 1]} : vector<8x256xf32> to vector<1x128xf32>
    %43 = vector.broadcast %42 : vector<1x128xf32> to vector<48x128xf32>
    %44 = arith.addf %41, %43 : vector<48x128xf32>
    %cst_23 = arith.constant 0.000000e+00 : f32
    %45 = vector.broadcast %cst_23 : f32 to vector<48x128xf32>
    %46 = arith.maximumf %44, %45 : vector<48x128xf32>
    %47 = arith.truncf %46 : vector<48x128xf32> to vector<48x128xbf16>
    %c0_24 = arith.constant 0 : index
    %c0_25 = arith.constant 0 : index
    %48 = vector.load %arg8[%c0_24, %c0_25] : memref<128x128xbf16, #tpu.memory_space<vmem>>, vector<128x128xbf16>
    %cst_26 = arith.constant dense<0.000000e+00> : vector<48x128xf32>
    %49 = tpu.matmul %47, %48, %cst_26 {dimension_numbers = #tpu.dot_dimension_numbers<[1], [0], [0], [1], [0, 0, 1, 1], [], []>} : vector<48x128xbf16>, vector<128x128xbf16>, vector<48x128xf32> -> vector<48x128xf32>
    %50 = vector.extract_strided_slice %0 {offsets = [5, 0], sizes = [1, 128], strides = [1, 1]} : vector<8x256xf32> to vector<1x128xf32>
    %51 = vector.broadcast %50 : vector<1x128xf32> to vector<48x128xf32>
    %52 = arith.addf %49, %51 : vector<48x128xf32>
    %c0_27 = arith.constant 0 : index
    %c0_28 = arith.constant 0 : index
    %53 = vector.load %arg10[%c0_27, %c0_28] : memref<48x384xf32, #tpu.memory_space<vmem>>, vector<48x128xf32>
    tpu.vector_store %arg10[%c0_27, %c0_28], %52 {strides = array<i32>} : memref<48x384xf32, #tpu.memory_space<vmem>>, vector<48x128xf32>,
    %c0_29 = arith.constant 0 : index
    %c128 = arith.constant 128 : index
    %54 = vector.load %arg10[%c0_29, %c128] : memref<48x384xf32, #tpu.memory_space<vmem>>, vector<48x256xf32>
    tpu.vector_store %arg10[%c0_29, %c128], %22 {strides = array<i32>} : memref<48x384xf32, #tpu.memory_space<vmem>>, vector<48x256xf32>,
    return
  }
  func.func @transform_0(%arg0: i32) -> (i32, i32) {
    %c0_i32 = arith.constant 0 : i32
    %c0_i32_0 = arith.constant 0 : i32
    return %arg0, %c0_i32 : i32, i32
  }
  func.func @transform_1(%arg0: i32) -> (i32, i32) {
    %c0_i32 = arith.constant 0 : i32
    %c0_i32_0 = arith.constant 0 : i32
    return %arg0, %c0_i32 : i32, i32
  }
  func.func @transform_2(%arg0: i32) -> (i32, i32) {
    %c0_i32 = arith.constant 0 : i32
    %c0_i32_0 = arith.constant 0 : i32
    %c0_i32_1 = arith.constant 0 : i32
    return %c0_i32, %c0_i32_0 : i32, i32
  }
  func.func @transform_3(%arg0: i32) -> (i32, i32) {
    %c0_i32 = arith.constant 0 : i32
    %c0_i32_0 = arith.constant 0 : i32
    %c0_i32_1 = arith.constant 0 : i32
    return %c0_i32, %c0_i32_0 : i32, i32
  }
  func.func @transform_4(%arg0: i32) -> (i32, i32) {
    %c0_i32 = arith.constant 0 : i32
    %c0_i32_0 = arith.constant 0 : i32
    %c0_i32_1 = arith.constant 0 : i32
    return %c0_i32, %c0_i32_0 : i32, i32
  }
  func.func @transform_5(%arg0: i32) -> (i32, i32) {
    %c0_i32 = arith.constant 0 : i32
    %c0_i32_0 = arith.constant 0 : i32
    %c0_i32_1 = arith.constant 0 : i32
    return %c0_i32, %c0_i32_0 : i32, i32
  }
  func.func @transform_6(%arg0: i32) -> (i32, i32) {
    %c0_i32 = arith.constant 0 : i32
    %c0_i32_0 = arith.constant 0 : i32
    %c0_i32_1 = arith.constant 0 : i32
    return %c0_i32, %c0_i32_0 : i32, i32
  }
  func.func @transform_7(%arg0: i32) -> (i32, i32) {
    %c0_i32 = arith.constant 0 : i32
    %c0_i32_0 = arith.constant 0 : i32
    %c0_i32_1 = arith.constant 0 : i32
    return %c0_i32, %c0_i32_0 : i32, i32
  }
  func.func @transform_8(%arg0: i32) -> (i32, i32) {
    %c0_i32 = arith.constant 0 : i32
    %c0_i32_0 = arith.constant 0 : i32
    %c0_i32_1 = arith.constant 0 : i32
    return %c0_i32, %c0_i32_0 : i32, i32
  }
  func.func @transform_9(%arg0: i32) -> (i32, i32) {
    %c0_i32 = arith.constant 0 : i32
    %c0_i32_0 = arith.constant 0 : i32
    return %arg0, %c0_i32 : i32, i32
  }
}

module attributes {stable_mosaic.version = 11 : i64} {
  func.func @kernel(%arg0: i32, %arg1: memref<48x128xbf16, #tpu.memory_space<vmem>>, %arg2: memref<48x128xf32, #tpu.memory_space<vmem>>, %arg3: memref<128x128xbf16, #tpu.memory_space<vmem>>, %arg4: memref<128x128xbf16, #tpu.memory_space<vmem>>, %arg5: memref<128x256xbf16, #tpu.memory_space<vmem>>, %arg6: memref<128x128xbf16, #tpu.memory_space<vmem>>, %arg7: memref<128x128xbf16, #tpu.memory_space<vmem>>, %arg8: memref<128x128xbf16, #tpu.memory_space<vmem>>, %arg9: memref<8x256xf32, #tpu.memory_space<vmem>>, %arg10: memref<48x384xf32, #tpu.memory_space<vmem>>) attributes {dimension_semantics = [#tpu.dimension_semantics<parallel>], iteration_bounds = array<i64: 2>, scalar_prefetch = 0 : i64, scratch_operands = 0 : i64, tpu.core_type = #tpu.core_type<tc>, window_params = [{transform_indices = @transform_0, window_bounds = array<i64: 48, 128>}, {transform_indices = @transform_1, window_bounds = array<i64: 48, 128>}, {pipeline_mode = #tpu.pipeline_mode<synchronous>, transform_indices = @transform_2, window_bounds = array<i64: 128, 128>}, {pipeline_mode = #tpu.pipeline_mode<synchronous>, transform_indices = @transform_3, window_bounds = array<i64: 128, 128>}, {pipeline_mode = #tpu.pipeline_mode<synchronous>, transform_indices = @transform_4, window_bounds = array<i64: 128, 256>}, {pipeline_mode = #tpu.pipeline_mode<synchronous>, transform_indices = @transform_5, window_bounds = array<i64: 128, 128>}, {pipeline_mode = #tpu.pipeline_mode<synchronous>, transform_indices = @transform_6, window_bounds = array<i64: 128, 128>}, {pipeline_mode = #tpu.pipeline_mode<synchronous>, transform_indices = @transform_7, window_bounds = array<i64: 128, 128>}, {pipeline_mode = #tpu.pipeline_mode<synchronous>, transform_indices = @transform_8, window_bounds = array<i64: 8, 256>}, {transform_indices = @transform_9, window_bounds = array<i64: 48, 384>}]} {
    %c0 = arith.constant 0 : index
    %c0_0 = arith.constant 0 : index
    %0 = vector.load %arg9[%c0, %c0_0] : memref<8x256xf32, #tpu.memory_space<vmem>>, vector<8x256xf32>
    %c0_1 = arith.constant 0 : index
    %c0_2 = arith.constant 0 : index
    %1 = vector.load %arg1[%c0_1, %c0_2] : memref<48x128xbf16, #tpu.memory_space<vmem>>, vector<48x128xbf16>
    %c0_3 = arith.constant 0 : index
    %c0_4 = arith.constant 0 : index
    %2 = vector.load %arg3[%c0_3, %c0_4] : memref<128x128xbf16, #tpu.memory_space<vmem>>, vector<128x128xbf16>
    %cst = arith.constant dense<0.000000e+00> : vector<48x128xf32>
    %3 = tpu.matmul %1, %2, %cst {dimension_numbers = #tpu.dot_dimension_numbers<[1], [0], [0], [1], [0, 0, 1, 1], [], []>} : vector<48x128xbf16>, vector<128x128xbf16>, vector<48x128xf32> -> vector<48x128xf32>
    %4 = vector.extract_strided_slice %0 {offsets = [0, 0], sizes = [1, 128], strides = [1, 1]} : vector<8x256xf32> to vector<1x128xf32>
    %5 = vector.broadcast %4 : vector<1x128xf32> to vector<48x128xf32>
    %6 = arith.addf %3, %5 : vector<48x128xf32>
    %cst_5 = arith.constant 0.000000e+00 : f32
    %7 = vector.broadcast %cst_5 : f32 to vector<48x128xf32>
    %8 = arith.maximumf %6, %7 : vector<48x128xf32>
    %9 = arith.truncf %8 : vector<48x128xf32> to vector<48x128xbf16>
    %c0_6 = arith.constant 0 : index
    %c0_7 = arith.constant 0 : index
    %10 = vector.load %arg4[%c0_6, %c0_7] : memref<128x128xbf16, #tpu.memory_space<vmem>>, vector<128x128xbf16>
    %cst_8 = arith.constant dense<0.000000e+00> : vector<48x128xf32>
    %11 = tpu.matmul %9, %10, %cst_8 {dimension_numbers = #tpu.dot_dimension_numbers<[1], [0], [0], [1], [0, 0, 1, 1], [], []>} : vector<48x128xbf16>, vector<128x128xbf16>, vector<48x128xf32> -> vector<48x128xf32>
    %12 = vector.extract_strided_slice %0 {offsets = [1, 0], sizes = [1, 128], strides = [1, 1]} : vector<8x256xf32> to vector<1x128xf32>
    %13 = vector.broadcast %12 : vector<1x128xf32> to vector<48x128xf32>
    %14 = arith.addf %11, %13 : vector<48x128xf32>
    %cst_9 = arith.constant 0.000000e+00 : f32
    %15 = vector.broadcast %cst_9 : f32 to vector<48x128xf32>
    %16 = arith.maximumf %14, %15 : vector<48x128xf32>
    %17 = arith.truncf %16 : vector<48x128xf32> to vector<48x128xbf16>
    %c0_10 = arith.constant 0 : index
    %c0_11 = arith.constant 0 : index
    %18 = vector.load %arg5[%c0_10, %c0_11] : memref<128x256xbf16, #tpu.memory_space<vmem>>, vector<128x256xbf16>
    %cst_12 = arith.constant dense<0.000000e+00> : vector<48x256xf32>
    %19 = tpu.matmul %17, %18, %cst_12 {dimension_numbers = #tpu.dot_dimension_numbers<[1], [0], [0], [1], [0, 0, 1, 1], [], []>} : vector<48x128xbf16>, vector<128x256xbf16>, vector<48x256xf32> -> vector<48x256xf32>
    %20 = vector.extract_strided_slice %0 {offsets = [2, 0], sizes = [1, 256], strides = [1, 1]} : vector<8x256xf32> to vector<1x256xf32>
    %21 = vector.broadcast %20 : vector<1x256xf32> to vector<48x256xf32>
    %22 = arith.addf %19, %21 : vector<48x256xf32>
    %23 = vector.extract_strided_slice %22 {offsets = [0, 0], sizes = [48, 128], strides = [1, 1]} : vector<48x256xf32> to vector<48x128xf32>
    %24 = vector.extract_strided_slice %22 {offsets = [0, 128], sizes = [48, 128], strides = [1, 1]} : vector<48x256xf32> to vector<48x128xf32>
    %c0_13 = arith.constant 0 : index
    %c0_14 = arith.constant 0 : index
    %25 = vector.load %arg2[%c0_13, %c0_14] : memref<48x128xf32, #tpu.memory_space<vmem>>, vector<48x128xf32>
    %cst_15 = arith.constant 5.000000e-01 : f32
    %26 = vector.broadcast %cst_15 : f32 to vector<48x128xf32>
    %27 = arith.mulf %26, %24 : vector<48x128xf32>
    %28 = math.exp %27 : vector<48x128xf32>
    %29 = arith.mulf %25, %28 : vector<48x128xf32>
    %30 = arith.addf %23, %29 : vector<48x128xf32>
    %31 = arith.truncf %30 : vector<48x128xf32> to vector<48x128xbf16>
    %c0_16 = arith.constant 0 : index
    %c0_17 = arith.constant 0 : index
    %32 = vector.load %arg6[%c0_16, %c0_17] : memref<128x128xbf16, #tpu.memory_space<vmem>>, vector<128x128xbf16>
    %cst_18 = arith.constant dense<0.000000e+00> : vector<48x128xf32>
    %33 = tpu.matmul %31, %32, %cst_18 {dimension_numbers = #tpu.dot_dimension_numbers<[1], [0], [0], [1], [0, 0, 1, 1], [], []>} : vector<48x128xbf16>, vector<128x128xbf16>, vector<48x128xf32> -> vector<48x128xf32>
    %34 = vector.extract_strided_slice %0 {offsets = [3, 0], sizes = [1, 128], strides = [1, 1]} : vector<8x256xf32> to vector<1x128xf32>
    %35 = vector.broadcast %34 : vector<1x128xf32> to vector<48x128xf32>
    %36 = arith.addf %33, %35 : vector<48x128xf32>
    %cst_19 = arith.constant 0.000000e+00 : f32
    %37 = vector.broadcast %cst_19 : f32 to vector<48x128xf32>
    %38 = arith.maximumf %36, %37 : vector<48x128xf32>
    %39 = arith.truncf %38 : vector<48x128xf32> to vector<48x128xbf16>
    %c0_20 = arith.constant 0 : index
    %c0_21 = arith.constant 0 : index
    %40 = vector.load %arg7[%c0_20, %c0_21] : memref<128x128xbf16, #tpu.memory_space<vmem>>, vector<128x128xbf16>
    %cst_22 = arith.constant dense<0.000000e+00> : vector<48x128xf32>
    %41 = tpu.matmul %39, %40, %cst_22 {dimension_numbers = #tpu.dot_dimension_numbers<[1], [0], [0], [1], [0, 0, 1, 1], [], []>} : vector<48x128xbf16>, vector<128x128xbf16>, vector<48x128xf32> -> vector<48x128xf32>
    %42 = vector.extract_strided_slice %0 {offsets = [4, 0], sizes = [1, 128], strides = [1, 1]} : vector<8x256xf32> to vector<1x128xf32>
    %43 = vector.broadcast %42 : vector<1x128xf32> to vector<48x128xf32>
    %44 = arith.addf %41, %43 : vector<48x128xf32>
    %cst_23 = arith.constant 0.000000e+00 : f32
    %45 = vector.broadcast %cst_23 : f32 to vector<48x128xf32>
    %46 = arith.maximumf %44, %45 : vector<48x128xf32>
    %47 = arith.truncf %46 : vector<48x128xf32> to vector<48x128xbf16>
    %c0_24 = arith.constant 0 : index
    %c0_25 = arith.constant 0 : index
    %48 = vector.load %arg8[%c0_24, %c0_25] : memref<128x128xbf16, #tpu.memory_space<vmem>>, vector<128x128xbf16>
    %cst_26 = arith.constant dense<0.000000e+00> : vector<48x128xf32>
    %49 = tpu.matmul %47, %48, %cst_26 {dimension_numbers = #tpu.dot_dimension_numbers<[1], [0], [0], [1], [0, 0, 1, 1], [], []>} : vector<48x128xbf16>, vector<128x128xbf16>, vector<48x128xf32> -> vector<48x128xf32>
    %50 = vector.extract_strided_slice %0 {offsets = [5, 0], sizes = [1, 128], strides = [1, 1]} : vector<8x256xf32> to vector<1x128xf32>
    %51 = vector.broadcast %50 : vector<1x128xf32> to vector<48x128xf32>
    %52 = arith.addf %49, %51 : vector<48x128xf32>
    %c0_27 = arith.constant 0 : index
    %c0_28 = arith.constant 0 : index
    %53 = vector.load %arg10[%c0_27, %c0_28] : memref<48x384xf32, #tpu.memory_space<vmem>>, vector<48x128xf32>
    tpu.vector_store %arg10[%c0_27, %c0_28], %52 {strides = array<i32>} : memref<48x384xf32, #tpu.memory_space<vmem>>, vector<48x128xf32>,
    %c0_29 = arith.constant 0 : index
    %c128 = arith.constant 128 : index
    %54 = vector.load %arg10[%c0_29, %c128] : memref<48x384xf32, #tpu.memory_space<vmem>>, vector<48x256xf32>
    tpu.vector_store %arg10[%c0_29, %c128], %22 {strides = array<i32>} : memref<48x384xf32, #tpu.memory_space<vmem>>, vector<48x256xf32>,
    return
  }
  func.func @transform_0(%arg0: i32) -> (i32, i32) {
    %c0_i32 = arith.constant 0 : i32
    %c0_i32_0 = arith.constant 0 : i32
    return %arg0, %c0_i32 : i32, i32
  }
  func.func @transform_1(%arg0: i32) -> (i32, i32) {
    %c0_i32 = arith.constant 0 : i32
    %c0_i32_0 = arith.constant 0 : i32
    return %arg0, %c0_i32 : i32, i32
  }
  func.func @transform_2(%arg0: i32) -> (i32, i32) {
    %c0_i32 = arith.constant 0 : i32
    %c0_i32_0 = arith.constant 0 : i32
    %c0_i32_1 = arith.constant 0 : i32
    return %c0_i32, %c0_i32_0 : i32, i32
  }
  func.func @transform_3(%arg0: i32) -> (i32, i32) {
    %c0_i32 = arith.constant 0 : i32
    %c0_i32_0 = arith.constant 0 : i32
    %c0_i32_1 = arith.constant 0 : i32
    return %c0_i32, %c0_i32_0 : i32, i32
  }
  func.func @transform_4(%arg0: i32) -> (i32, i32) {
    %c0_i32 = arith.constant 0 : i32
    %c0_i32_0 = arith.constant 0 : i32
    %c0_i32_1 = arith.constant 0 : i32
    return %c0_i32, %c0_i32_0 : i32, i32
  }
  func.func @transform_5(%arg0: i32) -> (i32, i32) {
    %c0_i32 = arith.constant 0 : i32
    %c0_i32_0 = arith.constant 0 : i32
    %c0_i32_1 = arith.constant 0 : i32
    return %c0_i32, %c0_i32_0 : i32, i32
  }
  func.func @transform_6(%arg0: i32) -> (i32, i32) {
    %c0_i32 = arith.constant 0 : i32
    %c0_i32_0 = arith.constant 0 : i32
    %c0_i32_1 = arith.constant 0 : i32
    return %c0_i32, %c0_i32_0 : i32, i32
  }
  func.func @transform_7(%arg0: i32) -> (i32, i32) {
    %c0_i32 = arith.constant 0 : i32
    %c0_i32_0 = arith.constant 0 : i32
    %c0_i32_1 = arith.constant 0 : i32
    return %c0_i32, %c0_i32_0 : i32, i32
  }
  func.func @transform_8(%arg0: i32) -> (i32, i32) {
    %c0_i32 = arith.constant 0 : i32
    %c0_i32_0 = arith.constant 0 : i32
    %c0_i32_1 = arith.constant 0 : i32
    return %c0_i32, %c0_i32_0 : i32, i32
  }
  func.func @transform_9(%arg0: i32) -> (i32, i32) {
    %c0_i32 = arith.constant 0 : i32
    %c0_i32_0 = arith.constant 0 : i32
    return %arg0, %c0_i32 : i32, i32
  }
}

</mosaic_0001>

<llo_original>
// kernel: tpu_custom_call.1
$region0: #{tpu_custom_call.1}
  #allocation0 [shape = 'u32[]', space=smem, size = 0x4, offset = 0x4, fixed_abs, tag = 'smem constant byte address 0x4 - core index']
  #allocation1 [shape = 'u32[72,128]{1,0:T(1,128)}', space=vmem, size = 0x9000, scoped, tag = 'internal scratch']
  %s0 = inlined_call_operand.hbm [shape: bf16[96,128], index: 0, kind: input, shape index: {}]
  %s1 = inlined_call_operand.hbm [shape: f32[96,128], index: 1, kind: input, shape index: {}]
  %s2 = inlined_call_operand.hbm [shape: bf16[128,128], index: 2, kind: input, shape index: {}]
  %s3 = inlined_call_operand.hbm [shape: bf16[128,128], index: 3, kind: input, shape index: {}]
  %s4 = inlined_call_operand.hbm [shape: bf16[128,256], index: 4, kind: input, shape index: {}]
  %s5 = inlined_call_operand.hbm [shape: bf16[128,128], index: 5, kind: input, shape index: {}]
  %s6 = inlined_call_operand.hbm [shape: bf16[128,128], index: 6, kind: input, shape index: {}]
  %s7 = inlined_call_operand.hbm [shape: bf16[128,128], index: 7, kind: input, shape index: {}]
  %s8 = inlined_call_operand.hbm [shape: f32[8,256], index: 8, kind: input, shape index: {}]
  %s9 = inlined_call_operand.hbm [shape: f32[96,384], index: 9, kind: output, shape index: {}]
  %s10 = sld [smem:[#allocation0]]
  $region105: #{tpu_custom_call.1} parent=0
    _
  %s12 = ssub.s32 1, %s10
  %s13 = scalar_select 0, %s12, %s10
  $region1: #{tpu_custom_call.1} parent=0
    #allocation2 [shape = 'u8[24576]{0}', space=vmem, size = 0x6000, scoped, tag = 'input window, operand 0']
    #allocation3 [shape = 's32[2]{0}', space=sflag, size = 0x8, scoped, tag = 'scoped memory for tpu_custom_call.1']
    #allocation4 [shape = 's32[2]{0}', space=sflag, size = 0x8, scoped, tag = 'scoped memory for tpu_custom_call.1']
    #allocation5 [shape = 'u8[49152]{0}', space=vmem, size = 0xc000, scoped, tag = 'input window, operand 1']
    #allocation6 [shape = 's32[2]{0}', space=sflag, size = 0x8, scoped, tag = 'scoped memory for tpu_custom_call.1']
    #allocation7 [shape = 'u8[32768]{0}', space=vmem, size = 0x8000, scoped, tag = 'input window, operand 2, single buffered']
    #allocation8 [shape = 'u8[32768]{0}', space=vmem, size = 0x8000, scoped, tag = 'input window, operand 3, single buffered']
    #allocation9 [shape = 's32[1]{0}', space=sflag, size = 0x4, scoped, tag = 'scoped memory for tpu_custom_call.1']
    #allocation10 [shape = 'u8[65536]{0}', space=vmem, size = 0x10000, scoped, tag = 'input window, operand 4, single buffered']
    #allocation11 [shape = 'u8[32768]{0}', space=vmem, size = 0x8000, scoped, tag = 'input window, operand 5, single buffered']
    #allocation12 [shape = 's32[1]{0}', space=sflag, size = 0x4, scoped, tag = 'scoped memory for tpu_custom_call.1']
    #allocation13 [shape = 'u8[32768]{0}', space=vmem, size = 0x8000, scoped, tag = 'input window, operand 6, single buffered']
    #allocation14 [shape = 'u8[32768]{0}', space=vmem, size = 0x8000, scoped, tag = 'input window, operand 7, single buffered']
    #allocation15 [shape = 's32[1]{0}', space=sflag, size = 0x4, scoped, tag = 'scoped memory for tpu_custom_call.1']
    #allocation16 [shape = 'u8[8192]{0}', space=vmem, size = 0x2000, scoped, tag = 'input window, operand 8, single buffered']
    #allocation17 [shape = 'u8[147456]{0}', space=vmem, size = 0x24000, scoped, tag = 'output window, operand 0']
    %14 = vsyncpa [#allocation3], 0
    %s15 = scalar_lea.sflag [#allocation3], 1
    %16 = vsyncpa %s15, 0
    %17 = vsyncpa [#allocation6], 0
    %s18 = scalar_lea.sflag [#allocation6], 1
    %19 = vsyncpa %s18, 0
    %20 = vsyncpa [#allocation9], 0
    %21 = vsyncpa [#allocation12], 0
    %22 = vsyncpa [#allocation15], 0
    %23 = vsyncpa [#allocation4], 0
    %s24 = scalar_lea.sflag [#allocation4], 1
    %25 = vsyncpa %s24, 0
    loop: start=0, step=1, limit=4
    $region2: #{tpu_custom_call.1} parent=1 // loop_pre_header
      _
    $region3: #{tpu_custom_call.1} parent=1 // loop_header
      %s27 = sphi 0, %s31
      %p28 = scmp.ge.s32.totalorder %s27, 4
      %s37 = sphi 0, %s39
      %s40 = sphi 0, %s37
      %s41 = sphi 0, %s40
      %s57 = sphi 0, %s41
      %s63 = sphi 0, %s65
      %s66 = sphi 0, %s63
      %s67 = sphi 0, %s66
      %s83 = sphi 0, %s67
      %s87 = sphi 0, %s87
      %s89 = sphi 0, %s87
      %s90 = sphi 0, %s89
      %s104 = sphi 0, %s90
      %s108 = sphi 0, %s108
      %s110 = sphi 0, %s108
      %s111 = sphi 0, %s110
      %s125 = sphi 0, %s111
      %s129 = sphi 0, %s129
      %s131 = sphi 0, %s129
      %s132 = sphi 0, %s131
      %s146 = sphi 0, %s132
      %s150 = sphi 0, %s150
      %s152 = sphi 0, %s150
      %s153 = sphi 0, %s152
      %s167 = sphi 0, %s153
      %s171 = sphi 0, %s171
      %s173 = sphi 0, %s171
      %s174 = sphi 0, %s173
      %s188 = sphi 0, %s174
      %s192 = sphi 0, %s192
      %s194 = sphi 0, %s192
      %s195 = sphi 0, %s194
      %s209 = sphi 0, %s195
      %s213 = sphi 0, %s213
      %s215 = sphi 0, %s213
      %s216 = sphi 0, %s215
      %s230 = sphi 0, %s216
      %s236 = sphi 0, %s238
      %s239 = sphi 0, %s236
      %s240 = sphi 0, %s239
      %s256 = sphi 0, %s240
    $region4: #{tpu_custom_call.1} parent=1 // loop_header_branch
      %30 = sbr.rel (%p28) target = $region8
    $region5: #{tpu_custom_call.1} parent=1 // loop_body
      %s32 = ssub.s32 %s27, 1
      %s33 = ssub.s32 %s27, 2
      %s34 = sadd.s32 %s27, 1
      %s35 = ssub.s32 %s27, %s34
      %p36 = scmp.eq.s32.totalorder %s35, 0
      %s38 = sadd.s32 %s37, 1
      %s39 = scalar_select %p36, %s37, %s38
      %p42 = pneg %p36
      %p43 = scmp.eq.s32.totalorder %s27, 1
      %p44 = por %p42, %p43
      %p45 = scmp.ne.s32.totalorder %s37, %s40
      %p46 = scmp.eq.s32.totalorder %s27, 0
      %p47 = por %p45, %p46
      %p48 = scmp.ne.s32.totalorder %s37, %s40
      %p49 = scmp.eq.s32.totalorder %s32, 1
      %p50 = por %p48, %p49
      %p51 = scmp.ne.s32.totalorder %s40, %s41
      %p52 = scmp.eq.s32.totalorder %s32, 0
      %p53 = por %p51, %p52
      %p54 = scmp.ne.s32.totalorder %s40, %s41
      %p55 = scmp.eq.s32.totalorder %s33, 1
      %p56 = por %p54, %p55
      %p58 = scmp.ne.s32.totalorder %s41, %s57
      %p59 = scmp.eq.s32.totalorder %s33, 0
      %p60 = por %p58, %p59
      %s61 = ssub.s32 %s27, %s34
      %p62 = scmp.eq.s32.totalorder %s61, 0
      %s64 = sadd.s32 %s63, 1
      %s65 = scalar_select %p62, %s63, %s64
      %p68 = pneg %p62
      %p69 = scmp.eq.s32.totalorder %s27, 1
      %p70 = por %p68, %p69
      %p71 = scmp.ne.s32.totalorder %s63, %s66
      %p72 = scmp.eq.s32.totalorder %s27, 0
      %p73 = por %p71, %p72
      %p74 = scmp.ne.s32.totalorder %s63, %s66
      %p75 = scmp.eq.s32.totalorder %s32, 1
      %p76 = por %p74, %p75
      %p77 = scmp.ne.s32.totalorder %s66, %s67
      %p78 = scmp.eq.s32.totalorder %s32, 0
      %p79 = por %p77, %p78
      %p80 = scmp.ne.s32.totalorder %s66, %s67
      %p81 = scmp.eq.s32.totalorder %s33, 1
      %p82 = por %p80, %p81
      %p84 = scmp.ne.s32.totalorder %s67, %s83
      %p85 = scmp.eq.s32.totalorder %s33, 0
      %p86 = por %p84, %p85
      %s88 = sadd.s32 %s87, 1
      %p91 = scmp.eq.s32.totalorder %s27, 1
      %p92 = scmp.ne.s32.totalorder %s87, %s89
      %p93 = scmp.eq.s32.totalorder %s27, 0
      %p94 = por %p92, %p93
      %p95 = scmp.ne.s32.totalorder %s87, %s89
      %p96 = scmp.eq.s32.totalorder %s32, 1
      %p97 = por %p95, %p96
      %p98 = scmp.ne.s32.totalorder %s89, %s90
      %p99 = scmp.eq.s32.totalorder %s32, 0
      %p100 = por %p98, %p99
      %p101 = scmp.ne.s32.totalorder %s89, %s90
      %p102 = scmp.eq.s32.totalorder %s33, 1
      %p103 = por %p101, %p102
      %p105 = scmp.ne.s32.totalorder %s90, %s104
      %p106 = scmp.eq.s32.totalorder %s33, 0
      %p107 = por %p105, %p106
      %s109 = sadd.s32 %s108, 1
      %p112 = scmp.eq.s32.totalorder %s27, 1
      %p113 = scmp.ne.s32.totalorder %s108, %s110
      %p114 = scmp.eq.s32.totalorder %s27, 0
      %p115 = por %p113, %p114
      %p116 = scmp.ne.s32.totalorder %s108, %s110
      %p117 = scmp.eq.s32.totalorder %s32, 1
      %p118 = por %p116, %p117
      %p119 = scmp.ne.s32.totalorder %s110, %s111
      %p120 = scmp.eq.s32.totalorder %s32, 0
      %p121 = por %p119, %p120
      %p122 = scmp.ne.s32.totalorder %s110, %s111
      %p123 = scmp.eq.s32.totalorder %s33, 1
      %p124 = por %p122, %p123
      %p126 = scmp.ne.s32.totalorder %s111, %s125
      %p127 = scmp.eq.s32.totalorder %s33, 0
      %p128 = por %p126, %p127
      %s130 = sadd.s32 %s129, 1
      %p133 = scmp.eq.s32.totalorder %s27, 1
      %p134 = scmp.ne.s32.totalorder %s129, %s131
      %p135 = scmp.eq.s32.totalorder %s27, 0
      %p136 = por %p134, %p135
      %p137 = scmp.ne.s32.totalorder %s129, %s131
      %p138 = scmp.eq.s32.totalorder %s32, 1
      %p139 = por %p137, %p138
      %p140 = scmp.ne.s32.totalorder %s131, %s132
      %p141 = scmp.eq.s32.totalorder %s32, 0
      %p142 = por %p140, %p141
      %p143 = scmp.ne.s32.totalorder %s131, %s132
      %p144 = scmp.eq.s32.totalorder %s33, 1
      %p145 = por %p143, %p144
      %p147 = scmp.ne.s32.totalorder %s132, %s146
      %p148 = scmp.eq.s32.totalorder %s33, 0
      %p149 = por %p147, %p148
      %s151 = sadd.s32 %s150, 1
      %p154 = scmp.eq.s32.totalorder %s27, 1
      %p155 = scmp.ne.s32.totalorder %s150, %s152
      %p156 = scmp.eq.s32.totalorder %s27, 0
      %p157 = por %p155, %p156
      %p158 = scmp.ne.s32.totalorder %s150, %s152
      %p159 = scmp.eq.s32.totalorder %s32, 1
      %p160 = por %p158, %p159
      %p161 = scmp.ne.s32.totalorder %s152, %s153
      %p162 = scmp.eq.s32.totalorder %s32, 0
      %p163 = por %p161, %p162
      %p164 = scmp.ne.s32.totalorder %s152, %s153
      %p165 = scmp.eq.s32.totalorder %s33, 1
      %p166 = por %p164, %p165
      %p168 = scmp.ne.s32.totalorder %s153, %s167
      %p169 = scmp.eq.s32.totalorder %s33, 0
      %p170 = por %p168, %p169
      %s172 = sadd.s32 %s171, 1
      %p175 = scmp.eq.s32.totalorder %s27, 1
      %p176 = scmp.ne.s32.totalorder %s171, %s173
      %p177 = scmp.eq.s32.totalorder %s27, 0
      %p178 = por %p176, %p177
      %p179 = scmp.ne.s32.totalorder %s171, %s173
      %p180 = scmp.eq.s32.totalorder %s32, 1
      %p181 = por %p179, %p180
      %p182 = scmp.ne.s32.totalorder %s173, %s174
      %p183 = scmp.eq.s32.totalorder %s32, 0
      %p184 = por %p182, %p183
      %p185 = scmp.ne.s32.totalorder %s173, %s174
      %p186 = scmp.eq.s32.totalorder %s33, 1
      %p187 = por %p185, %p186
      %p189 = scmp.ne.s32.totalorder %s174, %s188
      %p190 = scmp.eq.s32.totalorder %s33, 0
      %p191 = por %p189, %p190
      %s193 = sadd.s32 %s192, 1
      %p196 = scmp.eq.s32.totalorder %s27, 1
      %p197 = scmp.ne.s32.totalorder %s192, %s194
      %p198 = scmp.eq.s32.totalorder %s27, 0
      %p199 = por %p197, %p198
      %p200 = scmp.ne.s32.totalorder %s192, %s194
      %p201 = scmp.eq.s32.totalorder %s32, 1
      %p202 = por %p200, %p201
      %p203 = scmp.ne.s32.totalorder %s194, %s195
      %p204 = scmp.eq.s32.totalorder %s32, 0
      %p205 = por %p203, %p204
      %p206 = scmp.ne.s32.totalorder %s194, %s195
      %p207 = scmp.eq.s32.totalorder %s33, 1
      %p208 = por %p206, %p207
      %p210 = scmp.ne.s32.totalorder %s195, %s209
      %p211 = scmp.eq.s32.totalorder %s33, 0
      %p212 = por %p210, %p211
      %s214 = sadd.s32 %s213, 1
      %p217 = scmp.eq.s32.totalorder %s27, 1
      %p218 = scmp.ne.s32.totalorder %s213, %s215
      %p219 = scmp.eq.s32.totalorder %s27, 0
      %p220 = por %p218, %p219
      %p221 = scmp.ne.s32.totalorder %s213, %s215
      %p222 = scmp.eq.s32.totalorder %s32, 1
      %p223 = por %p221, %p222
      %p224 = scmp.ne.s32.totalorder %s215, %s216
      %p225 = scmp.eq.s32.totalorder %s32, 0
      %p226 = por %p224, %p225
      %p227 = scmp.ne.s32.totalorder %s215, %s216
      %p228 = scmp.eq.s32.totalorder %s33, 1
      %p229 = por %p227, %p228
      %p231 = scmp.ne.s32.totalorder %s216, %s230
      %p232 = scmp.eq.s32.totalorder %s33, 0
      %p233 = por %p231, %p232
      %s234 = ssub.s32 %s27, %s34
      %p235 = scmp.eq.s32.totalorder %s234, 0
      %s237 = sadd.s32 %s236, 1
      %s238 = scalar_select %p235, %s236, %s237
      %p241 = pneg %p235
      %p242 = scmp.eq.s32.totalorder %s27, 1
      %p243 = por %p241, %p242
      %p244 = scmp.ne.s32.totalorder %s236, %s239
      %p245 = scmp.eq.s32.totalorder %s27, 0
      %p246 = por %p244, %p245
      %p247 = scmp.ne.s32.totalorder %s236, %s239
      %p248 = scmp.eq.s32.totalorder %s32, 1
      %p249 = por %p247, %p248
      %p250 = scmp.ne.s32.totalorder %s239, %s240
      %p251 = scmp.eq.s32.totalorder %s32, 0
      %p252 = por %p250, %p251
      %p253 = scmp.ne.s32.totalorder %s239, %s240
      %p254 = scmp.eq.s32.totalorder %s33, 1
      %p255 = por %p253, %p254
      %p257 = scmp.ne.s32.totalorder %s240, %s256
      %p258 = scmp.eq.s32.totalorder %s33, 0
      %p259 = por %p257, %p258
      %p260 = scmp.le.s32.totalorder 1, %s27
      %p261 = scmp.lt.s32.totalorder %s27, 3
      %p262 = pnand %p260, %p261
      %p263 = pneg %p262
      // Predicated region
      $region9: #{tpu_custom_call.1} parent=5 // pred_check
        _
      $region10: #{tpu_custom_call.1} parent=5 // pred_check_branch
        %265 = sbr.rel (%p262) target = $region12
      $region11: #{tpu_custom_call.1} parent=5 // pred_region
        %s266 = ssub.s32 %s27, 1
        // Predicated region
        $region13: #{tpu_custom_call.1} parent=11 // pred_check
          %p267 = pneg %p100
        $region14: #{tpu_custom_call.1} parent=11 // pred_check_branch
          %269 = sbr.rel (%p267) target = $region16
        $region15: #{tpu_custom_call.1} parent=11 // pred_region
          %271 = vsyncadd [#allocation6], 0
          %s272 = sshll.u32 %s2, 4
          %s273 = int_to_ptr.hbm [resolvable:$true] %s272
          %s274 = sshll.u32 [#allocation7], 4
          %s275 = int_to_ptr.vmem [resolvable:$true] %s274
          %280 = dma.hbm_to_vmem [thread:$0]  %s273, 1024, %s275, [#allocation6], 64, 64, 4
        $region16: #{tpu_custom_call.1} parent=11 // pred_fallthru
          _
        // Predicated region
        $region17: #{tpu_custom_call.1} parent=11 // pred_check
          %p281 = pneg %p121
        $region18: #{tpu_custom_call.1} parent=11 // pred_check_branch
          %283 = sbr.rel (%p281) target = $region20
        $region19: #{tpu_custom_call.1} parent=11 // pred_region
          %285 = vsyncadd [#allocation9], 0
          %s286 = sshll.u32 %s3, 4
          %s287 = int_to_ptr.hbm [resolvable:$true] %s286
          %s288 = sshll.u32 [#allocation8], 4
          %s289 = int_to_ptr.vmem [resolvable:$true] %s288
          %294 = dma.hbm_to_vmem [thread:$0]  %s287, 1024, %s289, [#allocation9], 64, 64, 4
        $region20: #{tpu_custom_call.1} parent=11 // pred_fallthru
          _
        // Predicated region
        $region21: #{tpu_custom_call.1} parent=11 // pred_check
          %p295 = pneg %p142
        $region22: #{tpu_custom_call.1} parent=11 // pred_check_branch
          %297 = sbr.rel (%p295) target = $region24
        $region23: #{tpu_custom_call.1} parent=11 // pred_region
          %299 = vsyncadd [#allocation9], 0
          %s300 = sshll.u32 %s4, 4
          %s301 = int_to_ptr.hbm [resolvable:$true] %s300
          %s302 = sshll.u32 [#allocation10], 4
          %s303 = int_to_ptr.vmem [resolvable:$true] %s302
          %308 = dma.hbm_to_vmem [thread:$0]  %s301, 2048, %s303, [#allocation9], 128, 128, 8
        $region24: #{tpu_custom_call.1} parent=11 // pred_fallthru
          _
        // Predicated region
        $region25: #{tpu_custom_call.1} parent=11 // pred_check
          %p309 = pneg %p163
        $region26: #{tpu_custom_call.1} parent=11 // pred_check_branch
          %311 = sbr.rel (%p309) target = $region28
        $region27: #{tpu_custom_call.1} parent=11 // pred_region
          %313 = vsyncadd [#allocation12], 0
          %s314 = sshll.u32 %s5, 4
          %s315 = int_to_ptr.hbm [resolvable:$true] %s314
          %s316 = sshll.u32 [#allocation11], 4
          %s317 = int_to_ptr.vmem [resolvable:$true] %s316
          %322 = dma.hbm_to_vmem [thread:$0]  %s315, 1024, %s317, [#allocation12], 64, 64, 4
        $region28: #{tpu_custom_call.1} parent=11 // pred_fallthru
          _
        // Predicated region
        $region29: #{tpu_custom_call.1} parent=11 // pred_check
          %p323 = pneg %p184
        $region30: #{tpu_custom_call.1} parent=11 // pred_check_branch
          %325 = sbr.rel (%p323) target = $region32
        $region31: #{tpu_custom_call.1} parent=11 // pred_region
          %327 = vsyncadd [#allocation12], 0
          %s328 = sshll.u32 %s6, 4
          %s329 = int_to_ptr.hbm [resolvable:$true] %s328
          %s330 = sshll.u32 [#allocation13], 4
          %s331 = int_to_ptr.vmem [resolvable:$true] %s330
          %336 = dma.hbm_to_vmem [thread:$0]  %s329, 1024, %s331, [#allocation12], 64, 64, 4
        $region32: #{tpu_custom_call.1} parent=11 // pred_fallthru
          _
        // Predicated region
        $region33: #{tpu_custom_call.1} parent=11 // pred_check
          %p337 = pneg %p205
        $region34: #{tpu_custom_call.1} parent=11 // pred_check_branch
          %339 = sbr.rel (%p337) target = $region36
        $region35: #{tpu_custom_call.1} parent=11 // pred_region
          %341 = vsyncadd [#allocation15], 0
          %s342 = sshll.u32 %s7, 4
          %s343 = int_to_ptr.hbm [resolvable:$true] %s342
          %s344 = sshll.u32 [#allocation14], 4
          %s345 = int_to_ptr.vmem [resolvable:$true] %s344
          %350 = dma.hbm_to_vmem [thread:$0]  %s343, 1024, %s345, [#allocation15], 64, 64, 4
        $region36: #{tpu_custom_call.1} parent=11 // pred_fallthru
          _
        // Predicated region
        $region37: #{tpu_custom_call.1} parent=11 // pred_check
          %p351 = pneg %p226
        $region38: #{tpu_custom_call.1} parent=11 // pred_check_branch
          %353 = sbr.rel (%p351) target = $region40
        $region39: #{tpu_custom_call.1} parent=11 // pred_region
          %355 = vsyncadd [#allocation15], 0
          %s357 = sshll.u32 %s8, 4
          %s358 = int_to_ptr.hbm [resolvable:$true] %s357
          %s359 = sshll.u32 [#allocation16], 4
          %s360 = int_to_ptr.vmem [resolvable:$true] %s359
          %362 = dma.hbm_to_vmem [thread:$0]  %s358, 256, %s360, [#allocation15]
        $region40: #{tpu_custom_call.1} parent=11 // pred_fallthru
          _
      $region12: #{tpu_custom_call.1} parent=5 // pred_fallthru
        _
      %p363 = scmp.lt.s32.totalorder %s27, 2
      // Predicated region
      $region41: #{tpu_custom_call.1} parent=5 // pred_check
        %p364 = pneg %p363
      $region42: #{tpu_custom_call.1} parent=5 // pred_check_branch
        %366 = sbr.rel (%p364) target = $region44
      $region43: #{tpu_custom_call.1} parent=5 // pred_region
        // Predicated region
        $region45: #{tpu_custom_call.1} parent=43 // pred_check
          %p367 = pneg %p47
        $region46: #{tpu_custom_call.1} parent=43 // pred_check_branch
          %369 = sbr.rel (%p367) target = $region48
        $region47: #{tpu_custom_call.1} parent=43 // pred_region
          %s370 = sand.u32 %s37, 1
          %s371 = scalar_lea.sflag [#allocation3], %s370
          %s372 = sand.u32 %s37, 1
          %s373 = smul.addr %s372, 24
          %s374 = scalar_lea.vmem [#allocation2], %s373
          %s375 = smul.u32 6, %s27
          %377 = vsyncadd %s371, 0
          %s378 = smul.addr %s375, 4
          %s379 = scalar_lea.hbm %s0, %s378
          %s380 = sshll.u32 %s379, 4
          %s381 = int_to_ptr.hbm [resolvable:$true] %s380
          %s382 = sshll.u32 %s374, 4
          %s383 = int_to_ptr.vmem [resolvable:$true] %s382
          %388 = dma.hbm_to_vmem [thread:$0]  %s381, 384, %s383, %s371, 64, 64, 4
        $region48: #{tpu_custom_call.1} parent=43 // pred_fallthru
          _
        // Predicated region
        $region49: #{tpu_custom_call.1} parent=43 // pred_check
          %p389 = pneg %p73
        $region50: #{tpu_custom_call.1} parent=43 // pred_check_branch
          %391 = sbr.rel (%p389) target = $region52
        $region51: #{tpu_custom_call.1} parent=43 // pred_region
          %s392 = sand.u32 %s27, 1
          %s393 = scalar_lea.sflag [#allocation6], %s392
          %s394 = sand.u32 %s63, 1
          %s395 = smul.addr %s394, 48
          %s396 = scalar_lea.vmem [#allocation5], %s395
          %s397 = smul.u32 6, %s27
          %399 = vsyncadd %s393, 0
          %s400 = smul.addr %s397, 8
          %s401 = scalar_lea.hbm %s1, %s400
          %s402 = sshll.u32 %s401, 4
          %s403 = int_to_ptr.hbm [resolvable:$true] %s402
          %s404 = sshll.u32 %s396, 4
          %s405 = int_to_ptr.vmem [resolvable:$true] %s404
          %410 = dma.hbm_to_vmem [thread:$0]  %s403, 768, %s405, %s393, 128, 128, 8
        $region52: #{tpu_custom_call.1} parent=43 // pred_fallthru
          _
      $region44: #{tpu_custom_call.1} parent=5 // pred_fallthru
        _
      %p411 = scmp.le.s32.totalorder 1, %s27
      %p412 = scmp.lt.s32.totalorder %s27, 3
      %p413 = pnand %p411, %p412
      %p414 = pneg %p413
      // Predicated region
      $region53: #{tpu_custom_call.1} parent=5 // pred_check
        _
      $region54: #{tpu_custom_call.1} parent=5 // pred_check_branch
        %416 = sbr.rel (%p413) target = $region56
      $region55: #{tpu_custom_call.1} parent=5 // pred_region
        %s417 = ssub.s32 %s27, 1
        %s418 = sand.u32 %s40, 1
        %s419 = scalar_lea.sflag [#allocation3], %s418
        %s420 = sand.u32 %s40, 1
        %s421 = smul.addr %s420, 24
        %s422 = scalar_lea.vmem [#allocation2], %s421
        // Predicated region
        $region57: #{tpu_custom_call.1} parent=55 // pred_check
          %p423 = pneg %p53
        $region58: #{tpu_custom_call.1} parent=55 // pred_check_branch
          %425 = sbr.rel (%p423) target = $region60
        $region59: #{tpu_custom_call.1} parent=55 // pred_region
          %427 = dma.done %s419, 384
        $region60: #{tpu_custom_call.1} parent=55 // pred_fallthru
          _
        %s428 = sand.u32 %s32, 1
        %s429 = scalar_lea.sflag [#allocation6], %s428
        %s430 = sand.u32 %s66, 1
        %s431 = smul.addr %s430, 48
        %s432 = scalar_lea.vmem [#allocation5], %s431
        // Predicated region
        $region61: #{tpu_custom_call.1} parent=55 // pred_check
          %p433 = pneg %p79
        $region62: #{tpu_custom_call.1} parent=55 // pred_check_branch
          %435 = sbr.rel (%p433) target = $region64
        $region63: #{tpu_custom_call.1} parent=55 // pred_region
          %437 = dma.done %s429, 768
        $region64: #{tpu_custom_call.1} parent=55 // pred_fallthru
          _
        // Predicated region
        $region65: #{tpu_custom_call.1} parent=55 // pred_check
          %p438 = pneg %p100
        $region66: #{tpu_custom_call.1} parent=55 // pred_check_branch
          %440 = sbr.rel (%p438) target = $region68
        $region67: #{tpu_custom_call.1} parent=55 // pred_region
          %442 = dma.done [#allocation6], 1024
        $region68: #{tpu_custom_call.1} parent=55 // pred_fallthru
          _
        // Predicated region
        $region69: #{tpu_custom_call.1} parent=55 // pred_check
          %p443 = pneg %p121
        $region70: #{tpu_custom_call.1} parent=55 // pred_check_branch
          %445 = sbr.rel (%p443) target = $region72
        $region71: #{tpu_custom_call.1} parent=55 // pred_region
          %447 = dma.done [#allocation9], 1024
        $region72: #{tpu_custom_call.1} parent=55 // pred_fallthru
          _
        // Predicated region
        $region73: #{tpu_custom_call.1} parent=55 // pred_check
          %p448 = pneg %p142
        $region74: #{tpu_custom_call.1} parent=55 // pred_check_branch
          %450 = sbr.rel (%p448) target = $region76
        $region75: #{tpu_custom_call.1} parent=55 // pred_region
          %452 = dma.done [#allocation9], 2048
        $region76: #{tpu_custom_call.1} parent=55 // pred_fallthru
          _
        // Predicated region
        $region77: #{tpu_custom_call.1} parent=55 // pred_check
          %p453 = pneg %p163
        $region78: #{tpu_custom_call.1} parent=55 // pred_check_branch
          %455 = sbr.rel (%p453) target = $region80
        $region79: #{tpu_custom_call.1} parent=55 // pred_region
          %457 = dma.done [#allocation12], 1024
        $region80: #{tpu_custom_call.1} parent=55 // pred_fallthru
          _
        // Predicated region
        $region81: #{tpu_custom_call.1} parent=55 // pred_check
          %p458 = pneg %p184
        $region82: #{tpu_custom_call.1} parent=55 // pred_check_branch
          %460 = sbr.rel (%p458) target = $region84
        $region83: #{tpu_custom_call.1} parent=55 // pred_region
          %462 = dma.done [#allocation12], 1024
        $region84: #{tpu_custom_call.1} parent=55 // pred_fallthru
          _
        // Predicated region
        $region85: #{tpu_custom_call.1} parent=55 // pred_check
          %p463 = pneg %p205
        $region86: #{tpu_custom_call.1} parent=55 // pred_check_branch
          %465 = sbr.rel (%p463) target = $region88
        $region87: #{tpu_custom_call.1} parent=55 // pred_region
          %467 = dma.done [#allocation15], 1024
        $region88: #{tpu_custom_call.1} parent=55 // pred_fallthru
          _
        // Predicated region
        $region89: #{tpu_custom_call.1} parent=55 // pred_check
          %p468 = pneg %p226
        $region90: #{tpu_custom_call.1} parent=55 // pred_check_branch
          %470 = sbr.rel (%p468) target = $region92
        $region91: #{tpu_custom_call.1} parent=55 // pred_region
          %472 = dma.done [#allocation15], 256
        $region92: #{tpu_custom_call.1} parent=55 // pred_fallthru
          _
        %s473 = sand.u32 %s40, 1
        %s474 = scalar_lea.sflag [#allocation3], %s473
        %s475 = sand.u32 %s40, 1
        %s476 = smul.addr %s475, 24
        %s477 = scalar_lea.vmem [#allocation2], %s476
        %p478 = pneg %p53
        %p479 = pneg %p50
        %s480 = sand.u32 %s32, 1
        %s481 = scalar_lea.sflag [#allocation6], %s480
        %s482 = sand.u32 %s66, 1
        %s483 = smul.addr %s482, 48
        %s484 = scalar_lea.vmem [#allocation5], %s483
        %p485 = pneg %p79
        %p486 = pneg %p76
        %p487 = pneg %p100
        %p488 = pneg %p97
        %p489 = pneg %p121
        %p490 = pneg %p118
        %p491 = pneg %p142
        %p492 = pneg %p139
        %p493 = pneg %p163
        %p494 = pneg %p160
        %p495 = pneg %p184
        %p496 = pneg %p181
        %p497 = pneg %p205
        %p498 = pneg %p202
        %p499 = pneg %p226
        %p500 = pneg %p223
        %p501 = pneg %p252
        %p502 = pneg %p249
        %s503 = sand.u32 %s239, 1
        %s504 = scalar_lea.sflag [#allocation4], %s503
        %s505 = sand.u32 %s239, 1
        %s506 = smul.addr %s505, 144
        %s507 = scalar_lea.vmem [#allocation17], %s506
        %s508 = smul.u32 6, %s32
        %s509 = smul.u32 6, %s32
        %s510 = smul.u32 6, %s32
        %v511 = vld [vmem:[#allocation16] sm:$0xff]
        %v512 = vld [vmem:[#allocation16 + $0x8] sm:$0xff]
        %v513 = vld [vmem:[%s422] sm:$0xf]
        %v514 = vld [vmem:[%s422 + $0x4] sm:$0xf]
        %v515 = vld [vmem:[%s422 + $0x8] sm:$0xf]
        %v516 = vld [vmem:[%s422 + $0xc] sm:$0xf]
        %v517 = vld [vmem:[%s422 + $0x10] sm:$0xf]
        %v518 = vld [vmem:[%s422 + $0x14] sm:$0xf]
        %v519 = vld [vmem:[#allocation7] sm:$0xf]
        %v520 = vld [vmem:[#allocation7 + $0x4] sm:$0xf]
        %v521 = vld [vmem:[#allocation7 + $0x8] sm:$0xf]
        %v522 = vld [vmem:[#allocation7 + $0xc] sm:$0xf]
        %v523 = vld [vmem:[#allocation7 + $0x10] sm:$0xf]
        %v524 = vld [vmem:[#allocation7 + $0x14] sm:$0xf]
        %v525 = vld [vmem:[#allocation7 + $0x18] sm:$0xf]
        %v526 = vld [vmem:[#allocation7 + $0x1c] sm:$0xf]
        %v527 = vld [vmem:[#allocation7 + $0x20] sm:$0xf]
        %v528 = vld [vmem:[#allocation7 + $0x24] sm:$0xf]
        %v529 = vld [vmem:[#allocation7 + $0x28] sm:$0xf]
        %v530 = vld [vmem:[#allocation7 + $0x2c] sm:$0xf]
        %v531 = vld [vmem:[#allocation7 + $0x30] sm:$0xf]
        %v532 = vld [vmem:[#allocation7 + $0x34] sm:$0xf]
        %v533 = vld [vmem:[#allocation7 + $0x38] sm:$0xf]
        %v534 = vld [vmem:[#allocation7 + $0x3c] sm:$0xf]
        %v535 = vperm.slane %v511, 0
        %v542 = vunpack.c.l.b16 %v513
        %v543 = vunpack.c.l.b16 %v514
        %v544 = vunpack.c.l.b16 %v515
        %v545 = vunpack.c.l.b16 %v516
        %v546 = vunpack.c.l.b16 %v517
        %v547 = vunpack.c.l.b16 %v518
        %v548 = vpack.c.b16 %v543, %v542
        %v549 = vpack.c.b16 %v545, %v544
        %v550 = vpack.c.b16 %v547, %v546
        %v570 = vunpack.c.l.b16 %v519
        %v571 = vunpack.c.l.b16 %v520
        %v572 = vunpack.c.l.b16 %v521
        %v573 = vunpack.c.l.b16 %v522
        %v574 = vunpack.c.l.b16 %v523
        %v575 = vunpack.c.l.b16 %v524
        %v576 = vunpack.c.l.b16 %v525
        %v577 = vunpack.c.l.b16 %v526
        %v578 = vunpack.c.l.b16 %v527
        %v579 = vunpack.c.l.b16 %v528
        %v580 = vunpack.c.l.b16 %v529
        %v581 = vunpack.c.l.b16 %v530
        %v582 = vunpack.c.l.b16 %v531
        %v583 = vunpack.c.l.b16 %v532
        %v584 = vunpack.c.l.b16 %v533
        %v585 = vunpack.c.l.b16 %v534
        %v586 = vpack.c.b16 %v571, %v570
        %v587 = vpack.c.b16 %v573, %v572
        %v588 = vpack.c.b16 %v575, %v574
        %v589 = vpack.c.b16 %v577, %v576
        %v590 = vpack.c.b16 %v579, %v578
        %v591 = vpack.c.b16 %v581, %v580
        %v592 = vpack.c.b16 %v583, %v582
        %v593 = vpack.c.b16 %v585, %v584
        %602 = vmatpush.bf16.msra.mxu0 %v593
        %603 = vmatpush.bf16.msra.mxu0 %v592
        %604 = vmatpush.bf16.msra.mxu0 %v591
        %605 = vmatpush.bf16.msra.mxu0 %v590
        %606 = vmatpush.bf16.msra.mxu0 %v589
        %607 = vmatpush.bf16.msra.mxu0 %v588
        %608 = vmatpush.bf16.msra.mxu0 %v587
        %609 = vmatpush.bf16.msra.mxu0 %v586
        %610 = vmatmul.bf16.gmra.mxu0 %v548
        %v611 = vpop.f32.mrf.mxu0
        %v612 = vadd.f32 %v535, %v611
        %v613 = vpop.f32.mrf.mxu0
        %v614 = vadd.f32 %v535, %v613
        %615 = vmatmul.bf16.gmra.mxu0 %v549
        %v616 = vpop.f32.mrf.mxu0
        %v617 = vadd.f32 %v535, %v616
        %v618 = vpop.f32.mrf.mxu0
        %v619 = vadd.f32 %v535, %v618
        %620 = vmatmul.bf16.gmra.mxu0 %v550
        %v621 = vpop.f32.mrf.mxu0
        %v622 = vadd.f32 %v535, %v621
        %v623 = vpop.f32.mrf.mxu0
        %v624 = vadd.f32 %v535, %v623
        %625 = vdwg.mxu0
        %v626 = vmax.f32 %v612, 0.0
        %v627 = vmax.f32 %v614, 0.0
        %v628 = vmax.f32 %v617, 0.0
        %v629 = vmax.f32 %v619, 0.0
        %v630 = vmax.f32 %v622, 0.0
        %v631 = vmax.f32 %v624, 0.0
        %v632 = vpack.c.bf16 %v627, %v626
        %v633 = vpack.c.bf16 %v629, %v628
        %v634 = vpack.c.bf16 %v631, %v630
        %v635 = vld [vmem:[#allocation8] sm:$0xf]
        %v636 = vld [vmem:[#allocation8 + $0x4] sm:$0xf]
        %v637 = vld [vmem:[#allocation8 + $0x8] sm:$0xf]
        %v638 = vld [vmem:[#allocation8 + $0xc] sm:$0xf]
        %v639 = vld [vmem:[#allocation8 + $0x10] sm:$0xf]
        %v640 = vld [vmem:[#allocation8 + $0x14] sm:$0xf]
        %v641 = vld [vmem:[#allocation8 + $0x18] sm:$0xf]
        %v642 = vld [vmem:[#allocation8 + $0x1c] sm:$0xf]
        %v643 = vld [vmem:[#allocation8 + $0x20] sm:$0xf]
        %v644 = vld [vmem:[#allocation8 + $0x24] sm:$0xf]
        %v645 = vld [vmem:[#allocation8 + $0x28] sm:$0xf]
        %v646 = vld [vmem:[#allocation8 + $0x2c] sm:$0xf]
        %v647 = vld [vmem:[#allocation8 + $0x30] sm:$0xf]
        %v648 = vld [vmem:[#allocation8 + $0x34] sm:$0xf]
        %v649 = vld [vmem:[#allocation8 + $0x38] sm:$0xf]
        %v650 = vld [vmem:[#allocation8 + $0x3c] sm:$0xf]
        %v651 = vperm.slane %v511, 1
        %v668 = vunpack.c.l.b16 %v635
        %v669 = vunpack.c.l.b16 %v636
        %v670 = vunpack.c.l.b16 %v637
        %v671 = vunpack.c.l.b16 %v638
        %v672 = vunpack.c.l.b16 %v639
        %v673 = vunpack.c.l.b16 %v640
        %v674 = vunpack.c.l.b16 %v641
        %v675 = vunpack.c.l.b16 %v642
        %v676 = vunpack.c.l.b16 %v643
        %v677 = vunpack.c.l.b16 %v644
        %v678 = vunpack.c.l.b16 %v645
        %v679 = vunpack.c.l.b16 %v646
        %v680 = vunpack.c.l.b16 %v647
        %v681 = vunpack.c.l.b16 %v648
        %v682 = vunpack.c.l.b16 %v649
        %v683 = vunpack.c.l.b16 %v650
        %v684 = vpack.c.b16 %v669, %v668
        %v685 = vpack.c.b16 %v671, %v670
        %v686 = vpack.c.b16 %v673, %v672
        %v687 = vpack.c.b16 %v675, %v674
        %v688 = vpack.c.b16 %v677, %v676
        %v689 = vpack.c.b16 %v679, %v678
        %v690 = vpack.c.b16 %v681, %v680
        %v691 = vpack.c.b16 %v683, %v682
        %700 = vmatpush.bf16.msra.mxu0 %v691
        %701 = vmatpush.bf16.msra.mxu0 %v690
        %702 = vmatpush.bf16.msra.mxu0 %v689
        %703 = vmatpush.bf16.msra.mxu0 %v688
        %704 = vmatpush.bf16.msra.mxu0 %v687
        %705 = vmatpush.bf16.msra.mxu0 %v686
        %706 = vmatpush.bf16.msra.mxu0 %v685
        %707 = vmatpush.bf16.msra.mxu0 %v684
        %708 = vmatmul.bf16.gmra.mxu0 %v632
        %v709 = vpop.f32.mrf.mxu0
        %v710 = vadd.f32 %v651, %v709
        %v711 = vpop.f32.mrf.mxu0
        %v712 = vadd.f32 %v651, %v711
        %713 = vmatmul.bf16.gmra.mxu0 %v633
        %v714 = vpop.f32.mrf.mxu0
        %v715 = vadd.f32 %v651, %v714
        %v716 = vpop.f32.mrf.mxu0
        %v717 = vadd.f32 %v651, %v716
        %718 = vmatmul.bf16.gmra.mxu0 %v634
        %v719 = vpop.f32.mrf.mxu0
        %v720 = vadd.f32 %v651, %v719
        %v721 = vpop.f32.mrf.mxu0
        %v722 = vadd.f32 %v651, %v721
        %723 = vdwg.mxu0
        %v724 = vmax.f32 %v710, 0.0
        %v725 = vmax.f32 %v712, 0.0
        %v726 = vmax.f32 %v715, 0.0
        %v727 = vmax.f32 %v717, 0.0
        %v728 = vmax.f32 %v720, 0.0
        %v729 = vmax.f32 %v722, 0.0
        %v730 = vpack.c.bf16 %v725, %v724
        %v731 = vpack.c.bf16 %v727, %v726
        %v732 = vpack.c.bf16 %v729, %v728
        %v733 = vld [vmem:[#allocation10] sm:$0xff]
        %v734 = vld [vmem:[#allocation10 + $0x8] sm:$0xff]
        %v735 = vld [vmem:[#allocation10 + $0x10] sm:$0xff]
        %v736 = vld [vmem:[#allocation10 + $0x18] sm:$0xff]
        %v737 = vld [vmem:[#allocation10 + $0x20] sm:$0xff]
        %v738 = vld [vmem:[#allocation10 + $0x28] sm:$0xff]
        %v739 = vld [vmem:[#allocation10 + $0x30] sm:$0xff]
        %v740 = vld [vmem:[#allocation10 + $0x38] sm:$0xff]
        %v741 = vld [vmem:[#allocation10 + $0x40] sm:$0xff]
        %v742 = vld [vmem:[#allocation10 + $0x48] sm:$0xff]
        %v743 = vld [vmem:[#allocation10 + $0x50] sm:$0xff]
        %v744 = vld [vmem:[#allocation10 + $0x58] sm:$0xff]
        %v745 = vld [vmem:[#allocation10 + $0x60] sm:$0xff]
        %v746 = vld [vmem:[#allocation10 + $0x68] sm:$0xff]
        %v747 = vld [vmem:[#allocation10 + $0x70] sm:$0xff]
        %v748 = vld [vmem:[#allocation10 + $0x78] sm:$0xff]
        %v749 = vperm.slane %v511, 2
        %v750 = vperm.slane %v512, 2
        %v767 = vunpack.c.l.b16 %v733
        %v768 = vunpack.c.h.b16 %v733
        %v769 = vunpack.c.l.b16 %v734
        %v770 = vunpack.c.h.b16 %v734
        %v771 = vunpack.c.l.b16 %v735
        %v772 = vunpack.c.h.b16 %v735
        %v773 = vunpack.c.l.b16 %v736
        %v774 = vunpack.c.h.b16 %v736
        %v775 = vunpack.c.l.b16 %v737
        %v776 = vunpack.c.h.b16 %v737
        %v777 = vunpack.c.l.b16 %v738
        %v778 = vunpack.c.h.b16 %v738
        %v779 = vunpack.c.l.b16 %v739
        %v780 = vunpack.c.h.b16 %v739
        %v781 = vunpack.c.l.b16 %v740
        %v782 = vunpack.c.h.b16 %v740
        %v783 = vunpack.c.l.b16 %v741
        %v784 = vunpack.c.h.b16 %v741
        %v785 = vunpack.c.l.b16 %v742
        %v786 = vunpack.c.h.b16 %v742
        %v787 = vunpack.c.l.b16 %v743
        %v788 = vunpack.c.h.b16 %v743
        %v789 = vunpack.c.l.b16 %v744
        %v790 = vunpack.c.h.b16 %v744
        %v791 = vunpack.c.l.b16 %v745
        %v792 = vunpack.c.h.b16 %v745
        %v793 = vunpack.c.l.b16 %v746
        %v794 = vunpack.c.h.b16 %v746
        %v795 = vunpack.c.l.b16 %v747
        %v796 = vunpack.c.h.b16 %v747
        %v797 = vunpack.c.l.b16 %v748
        %v798 = vunpack.c.h.b16 %v748
        %v799 = vpack.c.b16 %v769, %v767
        %v800 = vpack.c.b16 %v770, %v768
        %v801 = vpack.c.b16 %v773, %v771
        %v802 = vpack.c.b16 %v774, %v772
        %v803 = vpack.c.b16 %v777, %v775
        %v804 = vpack.c.b16 %v778, %v776
        %v805 = vpack.c.b16 %v781, %v779
        %v806 = vpack.c.b16 %v782, %v780
        %v807 = vpack.c.b16 %v785, %v783
        %v808 = vpack.c.b16 %v786, %v784
        %v809 = vpack.c.b16 %v789, %v787
        %v810 = vpack.c.b16 %v790, %v788
        %v811 = vpack.c.b16 %v793, %v791
        %v812 = vpack.c.b16 %v794, %v792
        %v813 = vpack.c.b16 %v797, %v795
        %v814 = vpack.c.b16 %v798, %v796
        %831 = vmatpush.bf16.msra.mxu0 %v813
        %832 = vmatpush.bf16.msra.mxu0 %v811
        %833 = vmatpush.bf16.msra.mxu0 %v809
        %834 = vmatpush.bf16.msra.mxu0 %v807
        %835 = vmatpush.bf16.msra.mxu0 %v805
        %836 = vmatpush.bf16.msra.mxu0 %v803
        %837 = vmatpush.bf16.msra.mxu0 %v801
        %838 = vmatpush.bf16.msra.mxu0 %v799
        %839 = vmatmul.bf16.gmra.mxu0 %v730
        %v840 = vpop.f32.mrf.mxu0
        %v841 = vadd.f32 %v749, %v840
        %v842 = vpop.f32.mrf.mxu0
        %v843 = vadd.f32 %v749, %v842
        %844 = vmatmul.bf16.gmra.mxu0 %v731
        %v845 = vpop.f32.mrf.mxu0
        %v846 = vadd.f32 %v749, %v845
        %v847 = vpop.f32.mrf.mxu0
        %v848 = vadd.f32 %v749, %v847
        %849 = vmatmul.bf16.gmra.mxu0 %v732
        %v850 = vpop.f32.mrf.mxu0
        %v851 = vadd.f32 %v749, %v850
        %v852 = vpop.f32.mrf.mxu0
        %v853 = vadd.f32 %v749, %v852
        %854 = vdwg.mxu0
        %855 = vmatpush.bf16.msra.mxu0 %v814
        %856 = vmatpush.bf16.msra.mxu0 %v812
        %857 = vmatpush.bf16.msra.mxu0 %v810
        %858 = vmatpush.bf16.msra.mxu0 %v808
        %859 = vmatpush.bf16.msra.mxu0 %v806
        %860 = vmatpush.bf16.msra.mxu0 %v804
        %861 = vmatpush.bf16.msra.mxu0 %v802
        %862 = vmatpush.bf16.msra.mxu0 %v800
        %863 = vmatmul.bf16.gmra.mxu0 %v730
        %v864 = vpop.f32.mrf.mxu0
        %v865 = vadd.f32 %v750, %v864
        %v866 = vpop.f32.mrf.mxu0
        %v867 = vadd.f32 %v750, %v866
        %868 = vmatmul.bf16.gmra.mxu0 %v731
        %v869 = vpop.f32.mrf.mxu0
        %v870 = vadd.f32 %v750, %v869
        %v871 = vpop.f32.mrf.mxu0
        %v872 = vadd.f32 %v750, %v871
        %873 = vmatmul.bf16.gmra.mxu0 %v732
        %v874 = vpop.f32.mrf.mxu0
        %v875 = vadd.f32 %v750, %v874
        %v876 = vpop.f32.mrf.mxu0
        %v877 = vadd.f32 %v750, %v876
        %878 = vdwg.mxu0
        %v879 = vld [vmem:[%s432] sm:$0xff]
        %v880 = vld [vmem:[%s432 + $0x8] sm:$0xff]
        %v881 = vld [vmem:[%s432 + $0x10] sm:$0xff]
        %v882 = vld [vmem:[%s432 + $0x18] sm:$0xff]
        %v883 = vld [vmem:[%s432 + $0x20] sm:$0xff]
        %v884 = vld [vmem:[%s432 + $0x28] sm:$0xff]
        %v885 = vmul.f32 %v865, 0.5
        %v886 = vmul.f32 %v867, 0.5
        %v887 = vmul.f32 %v870, 0.5
        %v888 = vmul.f32 %v872, 0.5
        %v889 = vmul.f32 %v875, 0.5
        %v890 = vmul.f32 %v877, 0.5
        %v891 = vmul.f32 %v885, 1.442695
        %v892 = vpow.pop %v891
        %v893 = vmul.f32 %v886, 1.442695
        %v894 = vpow.pop %v893
        %v895 = vmul.f32 %v887, 1.442695
        %v896 = vpow.pop %v895
        %v897 = vmul.f32 %v888, 1.442695
        %v898 = vpow.pop %v897
        %v899 = vmul.f32 %v889, 1.442695
        %v900 = vpow.pop %v899
        %v901 = vmul.f32 %v890, 1.442695
        %v902 = vpow.pop %v901
        %v903 = vmul.f32 %v879, %v892
        %v904 = vmul.f32 %v880, %v894
        %v905 = vmul.f32 %v881, %v896
        %v906 = vmul.f32 %v882, %v898
        %v907 = vmul.f32 %v883, %v900
        %v908 = vmul.f32 %v884, %v902
        %v909 = vadd.f32 %v841, %v903
        %v910 = vadd.f32 %v843, %v904
        %v911 = vadd.f32 %v846, %v905
        %v912 = vadd.f32 %v848, %v906
        %v913 = vadd.f32 %v851, %v907
        %v914 = vadd.f32 %v853, %v908
        %v915 = vpack.c.bf16 %v910, %v909
        %v916 = vpack.c.bf16 %v912, %v911
        %v917 = vpack.c.bf16 %v914, %v913
        %v918 = vld [vmem:[#allocation11] sm:$0xf]
        %v919 = vld [vmem:[#allocation11 + $0x4] sm:$0xf]
        %v920 = vld [vmem:[#allocation11 + $0x8] sm:$0xf]
        %v921 = vld [vmem:[#allocation11 + $0xc] sm:$0xf]
        %v922 = vld [vmem:[#allocation11 + $0x10] sm:$0xf]
        %v923 = vld [vmem:[#allocation11 + $0x14] sm:$0xf]
        %v924 = vld [vmem:[#allocation11 + $0x18] sm:$0xf]
        %v925 = vld [vmem:[#allocation11 + $0x1c] sm:$0xf]
        %v926 = vld [vmem:[#allocation11 + $0x20] sm:$0xf]
        %v927 = vld [vmem:[#allocation11 + $0x24] sm:$0xf]
        %v928 = vld [vmem:[#allocation11 + $0x28] sm:$0xf]
        %v929 = vld [vmem:[#allocation11 + $0x2c] sm:$0xf]
        %v930 = vld [vmem:[#allocation11 + $0x30] sm:$0xf]
        %v931 = vld [vmem:[#allocation11 + $0x34] sm:$0xf]
        %v932 = vld [vmem:[#allocation11 + $0x38] sm:$0xf]
        %v933 = vld [vmem:[#allocation11 + $0x3c] sm:$0xf]
        %v934 = vperm.slane %v511, 3
        %v951 = vunpack.c.l.b16 %v918
        %v952 = vunpack.c.l.b16 %v919
        %v953 = vunpack.c.l.b16 %v920
        %v954 = vunpack.c.l.b16 %v921
        %v955 = vunpack.c.l.b16 %v922
        %v956 = vunpack.c.l.b16 %v923
        %v957 = vunpack.c.l.b16 %v924
        %v958 = vunpack.c.l.b16 %v925
        %v959 = vunpack.c.l.b16 %v926
        %v960 = vunpack.c.l.b16 %v927
        %v961 = vunpack.c.l.b16 %v928
        %v962 = vunpack.c.l.b16 %v929
        %v963 = vunpack.c.l.b16 %v930
        %v964 = vunpack.c.l.b16 %v931
        %v965 = vunpack.c.l.b16 %v932
        %v966 = vunpack.c.l.b16 %v933
        %v967 = vpack.c.b16 %v952, %v951
        %v968 = vpack.c.b16 %v954, %v953
        %v969 = vpack.c.b16 %v956, %v955
        %v970 = vpack.c.b16 %v958, %v957
        %v971 = vpack.c.b16 %v960, %v959
        %v972 = vpack.c.b16 %v962, %v961
        %v973 = vpack.c.b16 %v964, %v963
        %v974 = vpack.c.b16 %v966, %v965
        %983 = vmatpush.bf16.msra.mxu0 %v974
        %984 = vmatpush.bf16.msra.mxu0 %v973
        %985 = vmatpush.bf16.msra.mxu0 %v972
        %986 = vmatpush.bf16.msra.mxu0 %v971
        %987 = vmatpush.bf16.msra.mxu0 %v970
        %988 = vmatpush.bf16.msra.mxu0 %v969
        %989 = vmatpush.bf16.msra.mxu0 %v968
        %990 = vmatpush.bf16.msra.mxu0 %v967
        %991 = vmatmul.bf16.gmra.mxu0 %v915
        %v992 = vpop.f32.mrf.mxu0
        %v993 = vadd.f32 %v934, %v992
        %v994 = vpop.f32.mrf.mxu0
        %v995 = vadd.f32 %v934, %v994
        %996 = vmatmul.bf16.gmra.mxu0 %v916
        %v997 = vpop.f32.mrf.mxu0
        %v998 = vadd.f32 %v934, %v997
        %v999 = vpop.f32.mrf.mxu0
        %v1000 = vadd.f32 %v934, %v999
        %1001 = vmatmul.bf16.gmra.mxu0 %v917
        %v1002 = vpop.f32.mrf.mxu0
        %v1003 = vadd.f32 %v934, %v1002
        %v1004 = vpop.f32.mrf.mxu0
        %v1005 = vadd.f32 %v934, %v1004
        %1006 = vdwg.mxu0
        %v1007 = vmax.f32 %v993, 0.0
        %v1008 = vmax.f32 %v995, 0.0
        %v1009 = vmax.f32 %v998, 0.0
        %v1010 = vmax.f32 %v1000, 0.0
        %v1011 = vmax.f32 %v1003, 0.0
        %v1012 = vmax.f32 %v1005, 0.0
        %v1013 = vpack.c.bf16 %v1008, %v1007
        %v1014 = vpack.c.bf16 %v1010, %v1009
        %v1015 = vpack.c.bf16 %v1012, %v1011
        %v1016 = vld [vmem:[#allocation13] sm:$0xf]
        %v1017 = vld [vmem:[#allocation13 + $0x4] sm:$0xf]
        %v1018 = vld [vmem:[#allocation13 + $0x8] sm:$0xf]
        %v1019 = vld [vmem:[#allocation13 + $0xc] sm:$0xf]
        %v1020 = vld [vmem:[#allocation13 + $0x10] sm:$0xf]
        %v1021 = vld [vmem:[#allocation13 + $0x14] sm:$0xf]
        %v1022 = vld [vmem:[#allocation13 + $0x18] sm:$0xf]
        %v1023 = vld [vmem:[#allocation13 + $0x1c] sm:$0xf]
        %v1024 = vld [vmem:[#allocation13 + $0x20] sm:$0xf]
        %v1025 = vld [vmem:[#allocation13 + $0x24] sm:$0xf]
        %v1026 = vld [vmem:[#allocation13 + $0x28] sm:$0xf]
        %v1027 = vld [vmem:[#allocation13 + $0x2c] sm:$0xf]
        %v1028 = vld [vmem:[#allocation13 + $0x30] sm:$0xf]
        %v1029 = vld [vmem:[#allocation13 + $0x34] sm:$0xf]
        %v1030 = vld [vmem:[#allocation13 + $0x38] sm:$0xf]
        %v1031 = vld [vmem:[#allocation13 + $0x3c] sm:$0xf]
        %v1032 = vperm.slane %v511, 4
        %v1049 = vunpack.c.l.b16 %v1016
        %v1050 = vunpack.c.l.b16 %v1017
        %v1051 = vunpack.c.l.b16 %v1018
        %v1052 = vunpack.c.l.b16 %v1019
        %v1053 = vunpack.c.l.b16 %v1020
        %v1054 = vunpack.c.l.b16 %v1021
        %v1055 = vunpack.c.l.b16 %v1022
        %v1056 = vunpack.c.l.b16 %v1023
        %v1057 = vunpack.c.l.b16 %v1024
        %v1058 = vunpack.c.l.b16 %v1025
        %v1059 = vunpack.c.l.b16 %v1026
        %v1060 = vunpack.c.l.b16 %v1027
        %v1061 = vunpack.c.l.b16 %v1028
        %v1062 = vunpack.c.l.b16 %v1029
        %v1063 = vunpack.c.l.b16 %v1030
        %v1064 = vunpack.c.l.b16 %v1031
        %v1065 = vpack.c.b16 %v1050, %v1049
        %v1066 = vpack.c.b16 %v1052, %v1051
        %v1067 = vpack.c.b16 %v1054, %v1053
        %v1068 = vpack.c.b16 %v1056, %v1055
        %v1069 = vpack.c.b16 %v1058, %v1057
        %v1070 = vpack.c.b16 %v1060, %v1059
        %v1071 = vpack.c.b16 %v1062, %v1061
        %v1072 = vpack.c.b16 %v1064, %v1063
        %1081 = vmatpush.bf16.msra.mxu0 %v1072
        %1082 = vmatpush.bf16.msra.mxu0 %v1071
        %1083 = vmatpush.bf16.msra.mxu0 %v1070
        %1084 = vmatpush.bf16.msra.mxu0 %v1069
        %1085 = vmatpush.bf16.msra.mxu0 %v1068
        %1086 = vmatpush.bf16.msra.mxu0 %v1067
        %1087 = vmatpush.bf16.msra.mxu0 %v1066
        %1088 = vmatpush.bf16.msra.mxu0 %v1065
        %1089 = vmatmul.bf16.gmra.mxu0 %v1013
        %v1090 = vpop.f32.mrf.mxu0
        %v1091 = vadd.f32 %v1032, %v1090
        %v1092 = vpop.f32.mrf.mxu0
        %v1093 = vadd.f32 %v1032, %v1092
        %1094 = vmatmul.bf16.gmra.mxu0 %v1014
        %v1095 = vpop.f32.mrf.mxu0
        %v1096 = vadd.f32 %v1032, %v1095
        %v1097 = vpop.f32.mrf.mxu0
        %v1098 = vadd.f32 %v1032, %v1097
        %1099 = vmatmul.bf16.gmra.mxu0 %v1015
        %v1100 = vpop.f32.mrf.mxu0
        %v1101 = vadd.f32 %v1032, %v1100
        %v1102 = vpop.f32.mrf.mxu0
        %v1103 = vadd.f32 %v1032, %v1102
        %1104 = vdwg.mxu0
        %v1105 = vmax.f32 %v1091, 0.0
        %v1106 = vmax.f32 %v1093, 0.0
        %v1107 = vmax.f32 %v1096, 0.0
        %v1108 = vmax.f32 %v1098, 0.0
        %v1109 = vmax.f32 %v1101, 0.0
        %v1110 = vmax.f32 %v1103, 0.0
        %v1111 = vpack.c.bf16 %v1106, %v1105
        %v1112 = vpack.c.bf16 %v1108, %v1107
        %v1113 = vpack.c.bf16 %v1110, %v1109
        %v1114 = vld [vmem:[#allocation14] sm:$0xf]
        %v1115 = vld [vmem:[#allocation14 + $0x4] sm:$0xf]
        %v1116 = vld [vmem:[#allocation14 + $0x8] sm:$0xf]
        %v1117 = vld [vmem:[#allocation14 + $0xc] sm:$0xf]
        %v1118 = vld [vmem:[#allocation14 + $0x10] sm:$0xf]
        %v1119 = vld [vmem:[#allocation14 + $0x14] sm:$0xf]
        %v1120 = vld [vmem:[#allocation14 + $0x18] sm:$0xf]
        %v1121 = vld [vmem:[#allocation14 + $0x1c] sm:$0xf]
        %v1122 = vld [vmem:[#allocation14 + $0x20] sm:$0xf]
        %v1123 = vld [vmem:[#allocation14 + $0x24] sm:$0xf]
        %v1124 = vld [vmem:[#allocation14 + $0x28] sm:$0xf]
        %v1125 = vld [vmem:[#allocation14 + $0x2c] sm:$0xf]
        %v1126 = vld [vmem:[#allocation14 + $0x30] sm:$0xf]
        %v1127 = vld [vmem:[#allocation14 + $0x34] sm:$0xf]
        %v1128 = vld [vmem:[#allocation14 + $0x38] sm:$0xf]
        %v1129 = vld [vmem:[#allocation14 + $0x3c] sm:$0xf]
        %v1130 = vperm.slane %v511, 5
        %v1147 = vunpack.c.l.b16 %v1114
        %v1148 = vunpack.c.l.b16 %v1115
        %v1149 = vunpack.c.l.b16 %v1116
        %v1150 = vunpack.c.l.b16 %v1117
        %v1151 = vunpack.c.l.b16 %v1118
        %v1152 = vunpack.c.l.b16 %v1119
        %v1153 = vunpack.c.l.b16 %v1120
        %v1154 = vunpack.c.l.b16 %v1121
        %v1155 = vunpack.c.l.b16 %v1122
        %v1156 = vunpack.c.l.b16 %v1123
        %v1157 = vunpack.c.l.b16 %v1124
        %v1158 = vunpack.c.l.b16 %v1125
        %v1159 = vunpack.c.l.b16 %v1126
        %v1160 = vunpack.c.l.b16 %v1127
        %v1161 = vunpack.c.l.b16 %v1128
        %v1162 = vunpack.c.l.b16 %v1129
        %v1163 = vpack.c.b16 %v1148, %v1147
        %v1164 = vpack.c.b16 %v1150, %v1149
        %v1165 = vpack.c.b16 %v1152, %v1151
        %v1166 = vpack.c.b16 %v1154, %v1153
        %v1167 = vpack.c.b16 %v1156, %v1155
        %v1168 = vpack.c.b16 %v1158, %v1157
        %v1169 = vpack.c.b16 %v1160, %v1159
        %v1170 = vpack.c.b16 %v1162, %v1161
        %1179 = vmatpush.bf16.msra.mxu0 %v1170
        %1180 = vmatpush.bf16.msra.mxu0 %v1169
        %1181 = vmatpush.bf16.msra.mxu0 %v1168
        %1182 = vmatpush.bf16.msra.mxu0 %v1167
        %1183 = vmatpush.bf16.msra.mxu0 %v1166
        %1184 = vmatpush.bf16.msra.mxu0 %v1165
        %1185 = vmatpush.bf16.msra.mxu0 %v1164
        %1186 = vmatpush.bf16.msra.mxu0 %v1163
        %1187 = vmatmul.bf16.gmra.mxu0 %v1111
        %v1188 = vpop.f32.mrf.mxu0
        %v1189 = vadd.f32 %v1130, %v1188
        %v1190 = vpop.f32.mrf.mxu0
        %v1191 = vadd.f32 %v1130, %v1190
        %1192 = vmatmul.bf16.gmra.mxu0 %v1112
        %v1193 = vpop.f32.mrf.mxu0
        %v1194 = vadd.f32 %v1130, %v1193
        %v1195 = vpop.f32.mrf.mxu0
        %v1196 = vadd.f32 %v1130, %v1195
        %1197 = vmatmul.bf16.gmra.mxu0 %v1113
        %v1198 = vpop.f32.mrf.mxu0
        %v1199 = vadd.f32 %v1130, %v1198
        %v1200 = vpop.f32.mrf.mxu0
        %v1201 = vadd.f32 %v1130, %v1200
        %1202 = vdwg.mxu0
        %1203 = vst [vmem:[%s507] sm:$0xff] %v1189
        %1204 = vst [vmem:[%s507 + $0x18] sm:$0xff] %v1191
        %1205 = vst [vmem:[%s507 + $0x30] sm:$0xff] %v1194
        %1206 = vst [vmem:[%s507 + $0x48] sm:$0xff] %v1196
        %1207 = vst [vmem:[%s507 + $0x60] sm:$0xff] %v1199
        %1208 = vst [vmem:[%s507 + $0x78] sm:$0xff] %v1201
        %1209 = vst [vmem:[%s507 + $0x8] sm:$0xff] %v841
        %1210 = vst [vmem:[%s507 + $0x10] sm:$0xff] %v865
        %1211 = vst [vmem:[%s507 + $0x20] sm:$0xff] %v843
        %1212 = vst [vmem:[%s507 + $0x28] sm:$0xff] %v867
        %1213 = vst [vmem:[%s507 + $0x38] sm:$0xff] %v846
        %1214 = vst [vmem:[%s507 + $0x40] sm:$0xff] %v870
        %1215 = vst [vmem:[%s507 + $0x50] sm:$0xff] %v848
        %1216 = vst [vmem:[%s507 + $0x58] sm:$0xff] %v872
        %1217 = vst [vmem:[%s507 + $0x68] sm:$0xff] %v851
        %1218 = vst [vmem:[%s507 + $0x70] sm:$0xff] %v875
        %1219 = vst [vmem:[%s507 + $0x80] sm:$0xff] %v853
        %1220 = vst [vmem:[%s507 + $0x88] sm:$0xff] %v877
        %s1221 = sand.u32 %s239, 1
        %s1222 = scalar_lea.sflag [#allocation4], %s1221
        %s1223 = sand.u32 %s239, 1
        %s1224 = smul.addr %s1223, 144
        %s1225 = scalar_lea.vmem [#allocation17], %s1224
        // Predicated region
        $region93: #{tpu_custom_call.1} parent=55 // pred_check
          %p1226 = pneg %p249
        $region94: #{tpu_custom_call.1} parent=55 // pred_check_branch
          %1228 = sbr.rel (%p1226) target = $region96
        $region95: #{tpu_custom_call.1} parent=55 // pred_region
          %s1229 = smul.u32 6, %s32
          %1231 = vsyncadd %s1222, 0
          %s1232 = smul.addr %s1229, 3
          %s1233 = smul.addr %s1232, 8
          %s1234 = scalar_lea.hbm %s9, %s1233
          %s1235 = sshll.u32 %s1225, 4
          %s1236 = int_to_ptr.vmem [resolvable:$true] %s1235
          %s1237 = sshll.u32 %s1234, 4
          %s1238 = int_to_ptr.hbm [resolvable:$true] %s1237
          %1243 = dma.vmem_to_hbm [thread:$0]  %s1236, 2304, %s1238, %s1222, 384, 384, 24
        $region96: #{tpu_custom_call.1} parent=55 // pred_fallthru
          _
      $region56: #{tpu_custom_call.1} parent=5 // pred_fallthru
        _
      %p1244 = scmp.le.s32.totalorder 2, %s27
      // Predicated region
      $region97: #{tpu_custom_call.1} parent=5 // pred_check
        %p1245 = pneg %p1244
      $region98: #{tpu_custom_call.1} parent=5 // pred_check_branch
        %1247 = sbr.rel (%p1245) target = $region100
      $region99: #{tpu_custom_call.1} parent=5 // pred_region
        %s1248 = ssub.s32 %s27, 2
        // Predicated region
        $region101: #{tpu_custom_call.1} parent=99 // pred_check
          %p1249 = pneg %p255
        $region102: #{tpu_custom_call.1} parent=99 // pred_check_branch
          %1251 = sbr.rel (%p1249) target = $region104
        $region103: #{tpu_custom_call.1} parent=99 // pred_region
          %s1252 = sand.u32 %s240, 1
          %s1253 = scalar_lea.sflag [#allocation4], %s1252
          %s1254 = sand.u32 %s240, 1
          %s1255 = smul.addr %s1254, 144
          %s1256 = scalar_lea.vmem [#allocation17], %s1255
          %1258 = dma.done %s1253, 2304
        $region104: #{tpu_custom_call.1} parent=99 // pred_fallthru
          _
      $region100: #{tpu_custom_call.1} parent=5 // pred_fallthru
        _
    $region6: #{tpu_custom_call.1} parent=1 // loop_footer
      %s31 = sadd.s32 1, %s27
    $region7: #{tpu_custom_call.1} parent=1 // loop_footer_branch
      %26 = sbr.rel target = $region3
    $region8: #{tpu_custom_call.1} parent=1 // loop_exit
      _
    %1259 = vsyncpa [#allocation3], 1
    %s1260 = scalar_lea.sflag [#allocation3], 1
    %1261 = vsyncpa %s1260, 1
    %1262 = vsyncpa [#allocation6], 1
    %s1263 = scalar_lea.sflag [#allocation6], 1
    %1264 = vsyncpa %s1263, 1
    %1265 = vsyncpa [#allocation9], 1
    %1266 = vsyncpa [#allocation12], 1
    %1267 = vsyncpa [#allocation15], 1
    %1268 = vsyncpa [#allocation4], 1
    %s1269 = scalar_lea.sflag [#allocation4], 1
    %1270 = vsyncpa %s1269, 1

// kernel: tpu_custom_call.1
$region0: #{tpu_custom_call.1}
  #allocation0 [shape = 'u32[]', space=smem, size = 0x4, offset = 0x4, fixed_abs, tag = 'smem constant byte address 0x4 - core index']
  #allocation1 [shape = 'u32[72,128]{1,0:T(1,128)}', space=vmem, size = 0x9000, scoped, tag = 'internal scratch']
  %s0 = inlined_call_operand.hbm [shape: bf16[96,128], index: 0, kind: input, shape index: {}]
  %s1 = inlined_call_operand.hbm [shape: f32[96,128], index: 1, kind: input, shape index: {}]
  %s2 = inlined_call_operand.hbm [shape: bf16[128,128], index: 2, kind: input, shape index: {}]
  %s3 = inlined_call_operand.hbm [shape: bf16[128,128], index: 3, kind: input, shape index: {}]
  %s4 = inlined_call_operand.hbm [shape: bf16[128,256], index: 4, kind: input, shape index: {}]
  %s5 = inlined_call_operand.hbm [shape: bf16[128,128], index: 5, kind: input, shape index: {}]
  %s6 = inlined_call_operand.hbm [shape: bf16[128,128], index: 6, kind: input, shape index: {}]
  %s7 = inlined_call_operand.hbm [shape: bf16[128,128], index: 7, kind: input, shape index: {}]
  %s8 = inlined_call_operand.hbm [shape: f32[8,256], index: 8, kind: input, shape index: {}]
  %s9 = inlined_call_operand.hbm [shape: f32[96,384], index: 9, kind: output, shape index: {}]
  %s10 = sld [smem:[#allocation0]]
  $region105: #{tpu_custom_call.1} parent=0
    _
  %s12 = ssub.s32 1, %s10
  %s13 = scalar_select 0, %s12, %s10
  $region1: #{tpu_custom_call.1} parent=0
    #allocation2 [shape = 'u8[24576]{0}', space=vmem, size = 0x6000, scoped, tag = 'input window, operand 0']
    #allocation3 [shape = 's32[2]{0}', space=sflag, size = 0x8, scoped, tag = 'scoped memory for tpu_custom_call.1']
    #allocation4 [shape = 's32[2]{0}', space=sflag, size = 0x8, scoped, tag = 'scoped memory for tpu_custom_call.1']
    #allocation5 [shape = 'u8[49152]{0}', space=vmem, size = 0xc000, scoped, tag = 'input window, operand 1']
    #allocation6 [shape = 's32[2]{0}', space=sflag, size = 0x8, scoped, tag = 'scoped memory for tpu_custom_call.1']
    #allocation7 [shape = 'u8[32768]{0}', space=vmem, size = 0x8000, scoped, tag = 'input window, operand 2, single buffered']
    #allocation8 [shape = 'u8[32768]{0}', space=vmem, size = 0x8000, scoped, tag = 'input window, operand 3, single buffered']
    #allocation9 [shape = 's32[1]{0}', space=sflag, size = 0x4, scoped, tag = 'scoped memory for tpu_custom_call.1']
    #allocation10 [shape = 'u8[65536]{0}', space=vmem, size = 0x10000, scoped, tag = 'input window, operand 4, single buffered']
    #allocation11 [shape = 'u8[32768]{0}', space=vmem, size = 0x8000, scoped, tag = 'input window, operand 5, single buffered']
    #allocation12 [shape = 's32[1]{0}', space=sflag, size = 0x4, scoped, tag = 'scoped memory for tpu_custom_call.1']
    #allocation13 [shape = 'u8[32768]{0}', space=vmem, size = 0x8000, scoped, tag = 'input window, operand 6, single buffered']
    #allocation14 [shape = 'u8[32768]{0}', space=vmem, size = 0x8000, scoped, tag = 'input window, operand 7, single buffered']
    #allocation15 [shape = 's32[1]{0}', space=sflag, size = 0x4, scoped, tag = 'scoped memory for tpu_custom_call.1']
    #allocation16 [shape = 'u8[8192]{0}', space=vmem, size = 0x2000, scoped, tag = 'input window, operand 8, single buffered']
    #allocation17 [shape = 'u8[147456]{0}', space=vmem, size = 0x24000, scoped, tag = 'output window, operand 0']
    %14 = vsyncpa [#allocation3], 0
    %s15 = scalar_lea.sflag [#allocation3], 1
    %16 = vsyncpa %s15, 0
    %17 = vsyncpa [#allocation6], 0
    %s18 = scalar_lea.sflag [#allocation6], 1
    %19 = vsyncpa %s18, 0
    %20 = vsyncpa [#allocation9], 0
    %21 = vsyncpa [#allocation12], 0
    %22 = vsyncpa [#allocation15], 0
    %23 = vsyncpa [#allocation4], 0
    %s24 = scalar_lea.sflag [#allocation4], 1
    %25 = vsyncpa %s24, 0
    loop: start=0, step=1, limit=4
    $region2: #{tpu_custom_call.1} parent=1 // loop_pre_header
      _
    $region3: #{tpu_custom_call.1} parent=1 // loop_header
      %s27 = sphi 0, %s31
      %p28 = scmp.ge.s32.totalorder %s27, 4
      %s37 = sphi 0, %s39
      %s40 = sphi 0, %s37
      %s41 = sphi 0, %s40
      %s57 = sphi 0, %s41
      %s63 = sphi 0, %s65
      %s66 = sphi 0, %s63
      %s67 = sphi 0, %s66
      %s83 = sphi 0, %s67
      %s87 = sphi 0, %s87
      %s89 = sphi 0, %s87
      %s90 = sphi 0, %s89
      %s104 = sphi 0, %s90
      %s108 = sphi 0, %s108
      %s110 = sphi 0, %s108
      %s111 = sphi 0, %s110
      %s125 = sphi 0, %s111
      %s129 = sphi 0, %s129
      %s131 = sphi 0, %s129
      %s132 = sphi 0, %s131
      %s146 = sphi 0, %s132
      %s150 = sphi 0, %s150
      %s152 = sphi 0, %s150
      %s153 = sphi 0, %s152
      %s167 = sphi 0, %s153
      %s171 = sphi 0, %s171
      %s173 = sphi 0, %s171
      %s174 = sphi 0, %s173
      %s188 = sphi 0, %s174
      %s192 = sphi 0, %s192
      %s194 = sphi 0, %s192
      %s195 = sphi 0, %s194
      %s209 = sphi 0, %s195
      %s213 = sphi 0, %s213
      %s215 = sphi 0, %s213
      %s216 = sphi 0, %s215
      %s230 = sphi 0, %s216
      %s236 = sphi 0, %s238
      %s239 = sphi 0, %s236
      %s240 = sphi 0, %s239
      %s256 = sphi 0, %s240
    $region4: #{tpu_custom_call.1} parent=1 // loop_header_branch
      %30 = sbr.rel (%p28) target = $region8
    $region5: #{tpu_custom_call.1} parent=1 // loop_body
      %s32 = ssub.s32 %s27, 1
      %s33 = ssub.s32 %s27, 2
      %s34 = sadd.s32 %s27, 1
      %s35 = ssub.s32 %s27, %s34
      %p36 = scmp.eq.s32.totalorder %s35, 0
      %s38 = sadd.s32 %s37, 1
      %s39 = scalar_select %p36, %s37, %s38
      %p42 = pneg %p36
      %p43 = scmp.eq.s32.totalorder %s27, 1
      %p44 = por %p42, %p43
      %p45 = scmp.ne.s32.totalorder %s37, %s40
      %p46 = scmp.eq.s32.totalorder %s27, 0
      %p47 = por %p45, %p46
      %p48 = scmp.ne.s32.totalorder %s37, %s40
      %p49 = scmp.eq.s32.totalorder %s32, 1
      %p50 = por %p48, %p49
      %p51 = scmp.ne.s32.totalorder %s40, %s41
      %p52 = scmp.eq.s32.totalorder %s32, 0
      %p53 = por %p51, %p52
      %p54 = scmp.ne.s32.totalorder %s40, %s41
      %p55 = scmp.eq.s32.totalorder %s33, 1
      %p56 = por %p54, %p55
      %p58 = scmp.ne.s32.totalorder %s41, %s57
      %p59 = scmp.eq.s32.totalorder %s33, 0
      %p60 = por %p58, %p59
      %s61 = ssub.s32 %s27, %s34
      %p62 = scmp.eq.s32.totalorder %s61, 0
      %s64 = sadd.s32 %s63, 1
      %s65 = scalar_select %p62, %s63, %s64
      %p68 = pneg %p62
      %p69 = scmp.eq.s32.totalorder %s27, 1
      %p70 = por %p68, %p69
      %p71 = scmp.ne.s32.totalorder %s63, %s66
      %p72 = scmp.eq.s32.totalorder %s27, 0
      %p73 = por %p71, %p72
      %p74 = scmp.ne.s32.totalorder %s63, %s66
      %p75 = scmp.eq.s32.totalorder %s32, 1
      %p76 = por %p74, %p75
      %p77 = scmp.ne.s32.totalorder %s66, %s67
      %p78 = scmp.eq.s32.totalorder %s32, 0
      %p79 = por %p77, %p78
      %p80 = scmp.ne.s32.totalorder %s66, %s67
      %p81 = scmp.eq.s32.totalorder %s33, 1
      %p82 = por %p80, %p81
      %p84 = scmp.ne.s32.totalorder %s67, %s83
      %p85 = scmp.eq.s32.totalorder %s33, 0
      %p86 = por %p84, %p85
      %s88 = sadd.s32 %s87, 1
      %p91 = scmp.eq.s32.totalorder %s27, 1
      %p92 = scmp.ne.s32.totalorder %s87, %s89
      %p93 = scmp.eq.s32.totalorder %s27, 0
      %p94 = por %p92, %p93
      %p95 = scmp.ne.s32.totalorder %s87, %s89
      %p96 = scmp.eq.s32.totalorder %s32, 1
      %p97 = por %p95, %p96
      %p98 = scmp.ne.s32.totalorder %s89, %s90
      %p99 = scmp.eq.s32.totalorder %s32, 0
      %p100 = por %p98, %p99
      %p101 = scmp.ne.s32.totalorder %s89, %s90
      %p102 = scmp.eq.s32.totalorder %s33, 1
      %p103 = por %p101, %p102
      %p105 = scmp.ne.s32.totalorder %s90, %s104
      %p106 = scmp.eq.s32.totalorder %s33, 0
      %p107 = por %p105, %p106
      %s109 = sadd.s32 %s108, 1
      %p112 = scmp.eq.s32.totalorder %s27, 1
      %p113 = scmp.ne.s32.totalorder %s108, %s110
      %p114 = scmp.eq.s32.totalorder %s27, 0
      %p115 = por %p113, %p114
      %p116 = scmp.ne.s32.totalorder %s108, %s110
      %p117 = scmp.eq.s32.totalorder %s32, 1
      %p118 = por %p116, %p117
      %p119 = scmp.ne.s32.totalorder %s110, %s111
      %p120 = scmp.eq.s32.totalorder %s32, 0
      %p121 = por %p119, %p120
      %p122 = scmp.ne.s32.totalorder %s110, %s111
      %p123 = scmp.eq.s32.totalorder %s33, 1
      %p124 = por %p122, %p123
      %p126 = scmp.ne.s32.totalorder %s111, %s125
      %p127 = scmp.eq.s32.totalorder %s33, 0
      %p128 = por %p126, %p127
      %s130 = sadd.s32 %s129, 1
      %p133 = scmp.eq.s32.totalorder %s27, 1
      %p134 = scmp.ne.s32.totalorder %s129, %s131
      %p135 = scmp.eq.s32.totalorder %s27, 0
      %p136 = por %p134, %p135
      %p137 = scmp.ne.s32.totalorder %s129, %s131
      %p138 = scmp.eq.s32.totalorder %s32, 1
      %p139 = por %p137, %p138
      %p140 = scmp.ne.s32.totalorder %s131, %s132
      %p141 = scmp.eq.s32.totalorder %s32, 0
      %p142 = por %p140, %p141
      %p143 = scmp.ne.s32.totalorder %s131, %s132
      %p144 = scmp.eq.s32.totalorder %s33, 1
      %p145 = por %p143, %p144
      %p147 = scmp.ne.s32.totalorder %s132, %s146
      %p148 = scmp.eq.s32.totalorder %s33, 0
      %p149 = por %p147, %p148
      %s151 = sadd.s32 %s150, 1
      %p154 = scmp.eq.s32.totalorder %s27, 1
      %p155 = scmp.ne.s32.totalorder %s150, %s152
      %p156 = scmp.eq.s32.totalorder %s27, 0
      %p157 = por %p155, %p156
      %p158 = scmp.ne.s32.totalorder %s150, %s152
      %p159 = scmp.eq.s32.totalorder %s32, 1
      %p160 = por %p158, %p159
      %p161 = scmp.ne.s32.totalorder %s152, %s153
      %p162 = scmp.eq.s32.totalorder %s32, 0
      %p163 = por %p161, %p162
      %p164 = scmp.ne.s32.totalorder %s152, %s153
      %p165 = scmp.eq.s32.totalorder %s33, 1
      %p166 = por %p164, %p165
      %p168 = scmp.ne.s32.totalorder %s153, %s167
      %p169 = scmp.eq.s32.totalorder %s33, 0
      %p170 = por %p168, %p169
      %s172 = sadd.s32 %s171, 1
      %p175 = scmp.eq.s32.totalorder %s27, 1
      %p176 = scmp.ne.s32.totalorder %s171, %s173
      %p177 = scmp.eq.s32.totalorder %s27, 0
      %p178 = por %p176, %p177
      %p179 = scmp.ne.s32.totalorder %s171, %s173
      %p180 = scmp.eq.s32.totalorder %s32, 1
      %p181 = por %p179, %p180
      %p182 = scmp.ne.s32.totalorder %s173, %s174
      %p183 = scmp.eq.s32.totalorder %s32, 0
      %p184 = por %p182, %p183
      %p185 = scmp.ne.s32.totalorder %s173, %s174
      %p186 = scmp.eq.s32.totalorder %s33, 1
      %p187 = por %p185, %p186
      %p189 = scmp.ne.s32.totalorder %s174, %s188
      %p190 = scmp.eq.s32.totalorder %s33, 0
      %p191 = por %p189, %p190
      %s193 = sadd.s32 %s192, 1
      %p196 = scmp.eq.s32.totalorder %s27, 1
      %p197 = scmp.ne.s32.totalorder %s192, %s194
      %p198 = scmp.eq.s32.totalorder %s27, 0
      %p199 = por %p197, %p198
      %p200 = scmp.ne.s32.totalorder %s192, %s194
      %p201 = scmp.eq.s32.totalorder %s32, 1
      %p202 = por %p200, %p201
      %p203 = scmp.ne.s32.totalorder %s194, %s195
      %p204 = scmp.eq.s32.totalorder %s32, 0
      %p205 = por %p203, %p204
      %p206 = scmp.ne.s32.totalorder %s194, %s195
      %p207 = scmp.eq.s32.totalorder %s33, 1
      %p208 = por %p206, %p207
      %p210 = scmp.ne.s32.totalorder %s195, %s209
      %p211 = scmp.eq.s32.totalorder %s33, 0
      %p212 = por %p210, %p211
      %s214 = sadd.s32 %s213, 1
      %p217 = scmp.eq.s32.totalorder %s27, 1
      %p218 = scmp.ne.s32.totalorder %s213, %s215
      %p219 = scmp.eq.s32.totalorder %s27, 0
      %p220 = por %p218, %p219
      %p221 = scmp.ne.s32.totalorder %s213, %s215
      %p222 = scmp.eq.s32.totalorder %s32, 1
      %p223 = por %p221, %p222
      %p224 = scmp.ne.s32.totalorder %s215, %s216
      %p225 = scmp.eq.s32.totalorder %s32, 0
      %p226 = por %p224, %p225
      %p227 = scmp.ne.s32.totalorder %s215, %s216
      %p228 = scmp.eq.s32.totalorder %s33, 1
      %p229 = por %p227, %p228
      %p231 = scmp.ne.s32.totalorder %s216, %s230
      %p232 = scmp.eq.s32.totalorder %s33, 0
      %p233 = por %p231, %p232
      %s234 = ssub.s32 %s27, %s34
      %p235 = scmp.eq.s32.totalorder %s234, 0
      %s237 = sadd.s32 %s236, 1
      %s238 = scalar_select %p235, %s236, %s237
      %p241 = pneg %p235
      %p242 = scmp.eq.s32.totalorder %s27, 1
      %p243 = por %p241, %p242
      %p244 = scmp.ne.s32.totalorder %s236, %s239
      %p245 = scmp.eq.s32.totalorder %s27, 0
      %p246 = por %p244, %p245
      %p247 = scmp.ne.s32.totalorder %s236, %s239
      %p248 = scmp.eq.s32.totalorder %s32, 1
      %p249 = por %p247, %p248
      %p250 = scmp.ne.s32.totalorder %s239, %s240
      %p251 = scmp.eq.s32.totalorder %s32, 0
      %p252 = por %p250, %p251
      %p253 = scmp.ne.s32.totalorder %s239, %s240
      %p254 = scmp.eq.s32.totalorder %s33, 1
      %p255 = por %p253, %p254
      %p257 = scmp.ne.s32.totalorder %s240, %s256
      %p258 = scmp.eq.s32.totalorder %s33, 0
      %p259 = por %p257, %p258
      %p260 = scmp.le.s32.totalorder 1, %s27
      %p261 = scmp.lt.s32.totalorder %s27, 3
      %p262 = pnand %p260, %p261
      %p263 = pneg %p262
      // Predicated region
      $region9: #{tpu_custom_call.1} parent=5 // pred_check
        _
      $region10: #{tpu_custom_call.1} parent=5 // pred_check_branch
        %265 = sbr.rel (%p262) target = $region12
      $region11: #{tpu_custom_call.1} parent=5 // pred_region
        %s266 = ssub.s32 %s27, 1
        // Predicated region
        $region13: #{tpu_custom_call.1} parent=11 // pred_check
          %p267 = pneg %p100
        $region14: #{tpu_custom_call.1} parent=11 // pred_check_branch
          %269 = sbr.rel (%p267) target = $region16
        $region15: #{tpu_custom_call.1} parent=11 // pred_region
          %271 = vsyncadd [#allocation6], 0
          %s272 = sshll.u32 %s2, 4
          %s273 = int_to_ptr.hbm [resolvable:$true] %s272
          %s274 = sshll.u32 [#allocation7], 4
          %s275 = int_to_ptr.vmem [resolvable:$true] %s274
          %280 = dma.hbm_to_vmem [thread:$0]  %s273, 1024, %s275, [#allocation6], 64, 64, 4
        $region16: #{tpu_custom_call.1} parent=11 // pred_fallthru
          _
        // Predicated region
        $region17: #{tpu_custom_call.1} parent=11 // pred_check
          %p281 = pneg %p121
        $region18: #{tpu_custom_call.1} parent=11 // pred_check_branch
          %283 = sbr.rel (%p281) target = $region20
        $region19: #{tpu_custom_call.1} parent=11 // pred_region
          %285 = vsyncadd [#allocation9], 0
          %s286 = sshll.u32 %s3, 4
          %s287 = int_to_ptr.hbm [resolvable:$true] %s286
          %s288 = sshll.u32 [#allocation8], 4
          %s289 = int_to_ptr.vmem [resolvable:$true] %s288
          %294 = dma.hbm_to_vmem [thread:$0]  %s287, 1024, %s289, [#allocation9], 64, 64, 4
        $region20: #{tpu_custom_call.1} parent=11 // pred_fallthru
          _
        // Predicated region
        $region21: #{tpu_custom_call.1} parent=11 // pred_check
          %p295 = pneg %p142
        $region22: #{tpu_custom_call.1} parent=11 // pred_check_branch
          %297 = sbr.rel (%p295) target = $region24
        $region23: #{tpu_custom_call.1} parent=11 // pred_region
          %299 = vsyncadd [#allocation9], 0
          %s300 = sshll.u32 %s4, 4
          %s301 = int_to_ptr.hbm [resolvable:$true] %s300
          %s302 = sshll.u32 [#allocation10], 4
          %s303 = int_to_ptr.vmem [resolvable:$true] %s302
          %308 = dma.hbm_to_vmem [thread:$0]  %s301, 2048, %s303, [#allocation9], 128, 128, 8
        $region24: #{tpu_custom_call.1} parent=11 // pred_fallthru
          _
        // Predicated region
        $region25: #{tpu_custom_call.1} parent=11 // pred_check
          %p309 = pneg %p163
        $region26: #{tpu_custom_call.1} parent=11 // pred_check_branch
          %311 = sbr.rel (%p309) target = $region28
        $region27: #{tpu_custom_call.1} parent=11 // pred_region
          %313 = vsyncadd [#allocation12], 0
          %s314 = sshll.u32 %s5, 4
          %s315 = int_to_ptr.hbm [resolvable:$true] %s314
          %s316 = sshll.u32 [#allocation11], 4
          %s317 = int_to_ptr.vmem [resolvable:$true] %s316
          %322 = dma.hbm_to_vmem [thread:$0]  %s315, 1024, %s317, [#allocation12], 64, 64, 4
        $region28: #{tpu_custom_call.1} parent=11 // pred_fallthru
          _
        // Predicated region
        $region29: #{tpu_custom_call.1} parent=11 // pred_check
          %p323 = pneg %p184
        $region30: #{tpu_custom_call.1} parent=11 // pred_check_branch
          %325 = sbr.rel (%p323) target = $region32
        $region31: #{tpu_custom_call.1} parent=11 // pred_region
          %327 = vsyncadd [#allocation12], 0
          %s328 = sshll.u32 %s6, 4
          %s329 = int_to_ptr.hbm [resolvable:$true] %s328
          %s330 = sshll.u32 [#allocation13], 4
          %s331 = int_to_ptr.vmem [resolvable:$true] %s330
          %336 = dma.hbm_to_vmem [thread:$0]  %s329, 1024, %s331, [#allocation12], 64, 64, 4
        $region32: #{tpu_custom_call.1} parent=11 // pred_fallthru
          _
        // Predicated region
        $region33: #{tpu_custom_call.1} parent=11 // pred_check
          %p337 = pneg %p205
        $region34: #{tpu_custom_call.1} parent=11 // pred_check_branch
          %339 = sbr.rel (%p337) target = $region36
        $region35: #{tpu_custom_call.1} parent=11 // pred_region
          %341 = vsyncadd [#allocation15], 0
          %s342 = sshll.u32 %s7, 4
          %s343 = int_to_ptr.hbm [resolvable:$true] %s342
          %s344 = sshll.u32 [#allocation14], 4
          %s345 = int_to_ptr.vmem [resolvable:$true] %s344
          %350 = dma.hbm_to_vmem [thread:$0]  %s343, 1024, %s345, [#allocation15], 64, 64, 4
        $region36: #{tpu_custom_call.1} parent=11 // pred_fallthru
          _
        // Predicated region
        $region37: #{tpu_custom_call.1} parent=11 // pred_check
          %p351 = pneg %p226
        $region38: #{tpu_custom_call.1} parent=11 // pred_check_branch
          %353 = sbr.rel (%p351) target = $region40
        $region39: #{tpu_custom_call.1} parent=11 // pred_region
          %355 = vsyncadd [#allocation15], 0
          %s357 = sshll.u32 %s8, 4
          %s358 = int_to_ptr.hbm [resolvable:$true] %s357
          %s359 = sshll.u32 [#allocation16], 4
          %s360 = int_to_ptr.vmem [resolvable:$true] %s359
          %362 = dma.hbm_to_vmem [thread:$0]  %s358, 256, %s360, [#allocation15]
        $region40: #{tpu_custom_call.1} parent=11 // pred_fallthru
          _
      $region12: #{tpu_custom_call.1} parent=5 // pred_fallthru
        _
      %p363 = scmp.lt.s32.totalorder %s27, 2
      // Predicated region
      $region41: #{tpu_custom_call.1} parent=5 // pred_check
        %p364 = pneg %p363
      $region42: #{tpu_custom_call.1} parent=5 // pred_check_branch
        %366 = sbr.rel (%p364) target = $region44
      $region43: #{tpu_custom_call.1} parent=5 // pred_region
        // Predicated region
        $region45: #{tpu_custom_call.1} parent=43 // pred_check
          %p367 = pneg %p47
        $region46: #{tpu_custom_call.1} parent=43 // pred_check_branch
          %369 = sbr.rel (%p367) target = $region48
        $region47: #{tpu_custom_call.1} parent=43 // pred_region
          %s370 = sand.u32 %s37, 1
          %s371 = scalar_lea.sflag [#allocation3], %s370
          %s372 = sand.u32 %s37, 1
          %s373 = smul.addr %s372, 24
          %s374 = scalar_lea.vmem [#allocation2], %s373
          %s375 = smul.u32 6, %s27
          %377 = vsyncadd %s371, 0
          %s378 = smul.addr %s375, 4
          %s379 = scalar_lea.hbm %s0, %s378
          %s380 = sshll.u32 %s379, 4
          %s381 = int_to_ptr.hbm [resolvable:$true] %s380
          %s382 = sshll.u32 %s374, 4
          %s383 = int_to_ptr.vmem [resolvable:$true] %s382
          %388 = dma.hbm_to_vmem [thread:$0]  %s381, 384, %s383, %s371, 64, 64, 4
        $region48: #{tpu_custom_call.1} parent=43 // pred_fallthru
          _
        // Predicated region
        $region49: #{tpu_custom_call.1} parent=43 // pred_check
          %p389 = pneg %p73
        $region50: #{tpu_custom_call.1} parent=43 // pred_check_branch
          %391 = sbr.rel (%p389) target = $region52
        $region51: #{tpu_custom_call.1} parent=43 // pred_region
          %s392 = sand.u32 %s27, 1
          %s393 = scalar_lea.sflag [#allocation6], %s392
          %s394 = sand.u32 %s63, 1
          %s395 = smul.addr %s394, 48
          %s396 = scalar_lea.vmem [#allocation5], %s395
          %s397 = smul.u32 6, %s27
          %399 = vsyncadd %s393, 0
          %s400 = smul.addr %s397, 8
          %s401 = scalar_lea.hbm %s1, %s400
          %s402 = sshll.u32 %s401, 4
          %s403 = int_to_ptr.hbm [resolvable:$true] %s402
          %s404 = sshll.u32 %s396, 4
          %s405 = int_to_ptr.vmem [resolvable:$true] %s404
          %410 = dma.hbm_to_vmem [thread:$0]  %s403, 768, %s405, %s393, 128, 128, 8
        $region52: #{tpu_custom_call.1} parent=43 // pred_fallthru
          _
      $region44: #{tpu_custom_call.1} parent=5 // pred_fallthru
        _
      %p411 = scmp.le.s32.totalorder 1, %s27
      %p412 = scmp.lt.s32.totalorder %s27, 3
      %p413 = pnand %p411, %p412
      %p414 = pneg %p413
      // Predicated region
      $region53: #{tpu_custom_call.1} parent=5 // pred_check
        _
      $region54: #{tpu_custom_call.1} parent=5 // pred_check_branch
        %416 = sbr.rel (%p413) target = $region56
      $region55: #{tpu_custom_call.1} parent=5 // pred_region
        %s417 = ssub.s32 %s27, 1
        %s418 = sand.u32 %s40, 1
        %s419 = scalar_lea.sflag [#allocation3], %s418
        %s420 = sand.u32 %s40, 1
        %s421 = smul.addr %s420, 24
        %s422 = scalar_lea.vmem [#allocation2], %s421
        // Predicated region
        $region57: #{tpu_custom_call.1} parent=55 // pred_check
          %p423 = pneg %p53
        $region58: #{tpu_custom_call.1} parent=55 // pred_check_branch
          %425 = sbr.rel (%p423) target = $region60
        $region59: #{tpu_custom_call.1} parent=55 // pred_region
          %427 = dma.done %s419, 384
        $region60: #{tpu_custom_call.1} parent=55 // pred_fallthru
          _
        %s428 = sand.u32 %s32, 1
        %s429 = scalar_lea.sflag [#allocation6], %s428
        %s430 = sand.u32 %s66, 1
        %s431 = smul.addr %s430, 48
        %s432 = scalar_lea.vmem [#allocation5], %s431
        // Predicated region
        $region61: #{tpu_custom_call.1} parent=55 // pred_check
          %p433 = pneg %p79
        $region62: #{tpu_custom_call.1} parent=55 // pred_check_branch
          %435 = sbr.rel (%p433) target = $region64
        $region63: #{tpu_custom_call.1} parent=55 // pred_region
          %437 = dma.done %s429, 768
        $region64: #{tpu_custom_call.1} parent=55 // pred_fallthru
          _
        // Predicated region
        $region65: #{tpu_custom_call.1} parent=55 // pred_check
          %p438 = pneg %p100
        $region66: #{tpu_custom_call.1} parent=55 // pred_check_branch
          %440 = sbr.rel (%p438) target = $region68
        $region67: #{tpu_custom_call.1} parent=55 // pred_region
          %442 = dma.done [#allocation6], 1024
        $region68: #{tpu_custom_call.1} parent=55 // pred_fallthru
          _
        // Predicated region
        $region69: #{tpu_custom_call.1} parent=55 // pred_check
          %p443 = pneg %p121
        $region70: #{tpu_custom_call.1} parent=55 // pred_check_branch
          %445 = sbr.rel (%p443) target = $region72
        $region71: #{tpu_custom_call.1} parent=55 // pred_region
          %447 = dma.done [#allocation9], 1024
        $region72: #{tpu_custom_call.1} parent=55 // pred_fallthru
          _
        // Predicated region
        $region73: #{tpu_custom_call.1} parent=55 // pred_check
          %p448 = pneg %p142
        $region74: #{tpu_custom_call.1} parent=55 // pred_check_branch
          %450 = sbr.rel (%p448) target = $region76
        $region75: #{tpu_custom_call.1} parent=55 // pred_region
          %452 = dma.done [#allocation9], 2048
        $region76: #{tpu_custom_call.1} parent=55 // pred_fallthru
          _
        // Predicated region
        $region77: #{tpu_custom_call.1} parent=55 // pred_check
          %p453 = pneg %p163
        $region78: #{tpu_custom_call.1} parent=55 // pred_check_branch
          %455 = sbr.rel (%p453) target = $region80
        $region79: #{tpu_custom_call.1} parent=55 // pred_region
          %457 = dma.done [#allocation12], 1024
        $region80: #{tpu_custom_call.1} parent=55 // pred_fallthru
          _
        // Predicated region
        $region81: #{tpu_custom_call.1} parent=55 // pred_check
          %p458 = pneg %p184
        $region82: #{tpu_custom_call.1} parent=55 // pred_check_branch
          %460 = sbr.rel (%p458) target = $region84
        $region83: #{tpu_custom_call.1} parent=55 // pred_region
          %462 = dma.done [#allocation12], 1024
        $region84: #{tpu_custom_call.1} parent=55 // pred_fallthru
          _
        // Predicated region
        $region85: #{tpu_custom_call.1} parent=55 // pred_check
          %p463 = pneg %p205
        $region86: #{tpu_custom_call.1} parent=55 // pred_check_branch
          %465 = sbr.rel (%p463) target = $region88
        $region87: #{tpu_custom_call.1} parent=55 // pred_region
          %467 = dma.done [#allocation15], 1024
        $region88: #{tpu_custom_call.1} parent=55 // pred_fallthru
          _
        // Predicated region
        $region89: #{tpu_custom_call.1} parent=55 // pred_check
          %p468 = pneg %p226
        $region90: #{tpu_custom_call.1} parent=55 // pred_check_branch
          %470 = sbr.rel (%p468) target = $region92
        $region91: #{tpu_custom_call.1} parent=55 // pred_region
          %472 = dma.done [#allocation15], 256
        $region92: #{tpu_custom_call.1} parent=55 // pred_fallthru
          _
        %s473 = sand.u32 %s40, 1
        %s474 = scalar_lea.sflag [#allocation3], %s473
        %s475 = sand.u32 %s40, 1
        %s476 = smul.addr %s475, 24
        %s477 = scalar_lea.vmem [#allocation2], %s476
        %p478 = pneg %p53
        %p479 = pneg %p50
        %s480 = sand.u32 %s32, 1
        %s481 = scalar_lea.sflag [#allocation6], %s480
        %s482 = sand.u32 %s66, 1
        %s483 = smul.addr %s482, 48
        %s484 = scalar_lea.vmem [#allocation5], %s483
        %p485 = pneg %p79
        %p486 = pneg %p76
        %p487 = pneg %p100
        %p488 = pneg %p97
        %p489 = pneg %p121
        %p490 = pneg %p118
        %p491 = pneg %p142
        %p492 = pneg %p139
        %p493 = pneg %p163
        %p494 = pneg %p160
        %p495 = pneg %p184
        %p496 = pneg %p181
        %p497 = pneg %p205
        %p498 = pneg %p202
        %p499 = pneg %p226
        %p500 = pneg %p223
        %p501 = pneg %p252
        %p502 = pneg %p249
        %s503 = sand.u32 %s239, 1
        %s504 = scalar_lea.sflag [#allocation4], %s503
        %s505 = sand.u32 %s239, 1
        %s506 = smul.addr %s505, 144
        %s507 = scalar_lea.vmem [#allocation17], %s506
        %s508 = smul.u32 6, %s32
        %s509 = smul.u32 6, %s32
        %s510 = smul.u32 6, %s32
        %v511 = vld [vmem:[#allocation16] sm:$0xff]
        %v512 = vld [vmem:[#allocation16 + $0x8] sm:$0xff]
        %v513 = vld [vmem:[%s422] sm:$0xf]
        %v514 = vld [vmem:[%s422 + $0x4] sm:$0xf]
        %v515 = vld [vmem:[%s422 + $0x8] sm:$0xf]
        %v516 = vld [vmem:[%s422 + $0xc] sm:$0xf]
        %v517 = vld [vmem:[%s422 + $0x10] sm:$0xf]
        %v518 = vld [vmem:[%s422 + $0x14] sm:$0xf]
        %v519 = vld [vmem:[#allocation7] sm:$0xf]
        %v520 = vld [vmem:[#allocation7 + $0x4] sm:$0xf]
        %v521 = vld [vmem:[#allocation7 + $0x8] sm:$0xf]
        %v522 = vld [vmem:[#allocation7 + $0xc] sm:$0xf]
        %v523 = vld [vmem:[#allocation7 + $0x10] sm:$0xf]
        %v524 = vld [vmem:[#allocation7 + $0x14] sm:$0xf]
        %v525 = vld [vmem:[#allocation7 + $0x18] sm:$0xf]
        %v526 = vld [vmem:[#allocation7 + $0x1c] sm:$0xf]
        %v527 = vld [vmem:[#allocation7 + $0x20] sm:$0xf]
        %v528 = vld [vmem:[#allocation7 + $0x24] sm:$0xf]
        %v529 = vld [vmem:[#allocation7 + $0x28] sm:$0xf]
        %v530 = vld [vmem:[#allocation7 + $0x2c] sm:$0xf]
        %v531 = vld [vmem:[#allocation7 + $0x30] sm:$0xf]
        %v532 = vld [vmem:[#allocation7 + $0x34] sm:$0xf]
        %v533 = vld [vmem:[#allocation7 + $0x38] sm:$0xf]
        %v534 = vld [vmem:[#allocation7 + $0x3c] sm:$0xf]
        %v535 = vperm.slane %v511, 0
        %v542 = vunpack.c.l.b16 %v513
        %v543 = vunpack.c.l.b16 %v514
        %v544 = vunpack.c.l.b16 %v515
        %v545 = vunpack.c.l.b16 %v516
        %v546 = vunpack.c.l.b16 %v517
        %v547 = vunpack.c.l.b16 %v518
        %v548 = vpack.c.b16 %v543, %v542
        %v549 = vpack.c.b16 %v545, %v544
        %v550 = vpack.c.b16 %v547, %v546
        %v570 = vunpack.c.l.b16 %v519
        %v571 = vunpack.c.l.b16 %v520
        %v572 = vunpack.c.l.b16 %v521
        %v573 = vunpack.c.l.b16 %v522
        %v574 = vunpack.c.l.b16 %v523
        %v575 = vunpack.c.l.b16 %v524
        %v576 = vunpack.c.l.b16 %v525
        %v577 = vunpack.c.l.b16 %v526
        %v578 = vunpack.c.l.b16 %v527
        %v579 = vunpack.c.l.b16 %v528
        %v580 = vunpack.c.l.b16 %v529
        %v581 = vunpack.c.l.b16 %v530
        %v582 = vunpack.c.l.b16 %v531
        %v583 = vunpack.c.l.b16 %v532
        %v584 = vunpack.c.l.b16 %v533
        %v585 = vunpack.c.l.b16 %v534
        %v586 = vpack.c.b16 %v571, %v570
        %v587 = vpack.c.b16 %v573, %v572
        %v588 = vpack.c.b16 %v575, %v574
        %v589 = vpack.c.b16 %v577, %v576
        %v590 = vpack.c.b16 %v579, %v578
        %v591 = vpack.c.b16 %v581, %v580
        %v592 = vpack.c.b16 %v583, %v582
        %v593 = vpack.c.b16 %v585, %v584
        %602 = vmatpush.bf16.msra.mxu0 %v593
        %603 = vmatpush.bf16.msra.mxu0 %v592
        %604 = vmatpush.bf16.msra.mxu0 %v591
        %605 = vmatpush.bf16.msra.mxu0 %v590
        %606 = vmatpush.bf16.msra.mxu0 %v589
        %607 = vmatpush.bf16.msra.mxu0 %v588
        %608 = vmatpush.bf16.msra.mxu0 %v587
        %609 = vmatpush.bf16.msra.mxu0 %v586
        %610 = vmatmul.bf16.gmra.mxu0 %v548
        %v611 = vpop.f32.mrf.mxu0
        %v612 = vadd.f32 %v535, %v611
        %v613 = vpop.f32.mrf.mxu0
        %v614 = vadd.f32 %v535, %v613
        %615 = vmatmul.bf16.gmra.mxu0 %v549
        %v616 = vpop.f32.mrf.mxu0
        %v617 = vadd.f32 %v535, %v616
        %v618 = vpop.f32.mrf.mxu0
        %v619 = vadd.f32 %v535, %v618
        %620 = vmatmul.bf16.gmra.mxu0 %v550
        %v621 = vpop.f32.mrf.mxu0
        %v622 = vadd.f32 %v535, %v621
        %v623 = vpop.f32.mrf.mxu0
        %v624 = vadd.f32 %v535, %v623
        %625 = vdwg.mxu0
        %v626 = vmax.f32 %v612, 0.0
        %v627 = vmax.f32 %v614, 0.0
        %v628 = vmax.f32 %v617, 0.0
        %v629 = vmax.f32 %v619, 0.0
        %v630 = vmax.f32 %v622, 0.0
        %v631 = vmax.f32 %v624, 0.0
        %v632 = vpack.c.bf16 %v627, %v626
        %v633 = vpack.c.bf16 %v629, %v628
        %v634 = vpack.c.bf16 %v631, %v630
        %v635 = vld [vmem:[#allocation8] sm:$0xf]
        %v636 = vld [vmem:[#allocation8 + $0x4] sm:$0xf]
        %v637 = vld [vmem:[#allocation8 + $0x8] sm:$0xf]
        %v638 = vld [vmem:[#allocation8 + $0xc] sm:$0xf]
        %v639 = vld [vmem:[#allocation8 + $0x10] sm:$0xf]
        %v640 = vld [vmem:[#allocation8 + $0x14] sm:$0xf]
        %v641 = vld [vmem:[#allocation8 + $0x18] sm:$0xf]
        %v642 = vld [vmem:[#allocation8 + $0x1c] sm:$0xf]
        %v643 = vld [vmem:[#allocation8 + $0x20] sm:$0xf]
        %v644 = vld [vmem:[#allocation8 + $0x24] sm:$0xf]
        %v645 = vld [vmem:[#allocation8 + $0x28] sm:$0xf]
        %v646 = vld [vmem:[#allocation8 + $0x2c] sm:$0xf]
        %v647 = vld [vmem:[#allocation8 + $0x30] sm:$0xf]
        %v648 = vld [vmem:[#allocation8 + $0x34] sm:$0xf]
        %v649 = vld [vmem:[#allocation8 + $0x38] sm:$0xf]
        %v650 = vld [vmem:[#allocation8 + $0x3c] sm:$0xf]
        %v651 = vperm.slane %v511, 1
        %v668 = vunpack.c.l.b16 %v635
        %v669 = vunpack.c.l.b16 %v636
        %v670 = vunpack.c.l.b16 %v637
        %v671 = vunpack.c.l.b16 %v638
        %v672 = vunpack.c.l.b16 %v639
        %v673 = vunpack.c.l.b16 %v640
        %v674 = vunpack.c.l.b16 %v641
        %v675 = vunpack.c.l.b16 %v642
        %v676 = vunpack.c.l.b16 %v643
        %v677 = vunpack.c.l.b16 %v644
        %v678 = vunpack.c.l.b16 %v645
        %v679 = vunpack.c.l.b16 %v646
        %v680 = vunpack.c.l.b16 %v647
        %v681 = vunpack.c.l.b16 %v648
        %v682 = vunpack.c.l.b16 %v649
        %v683 = vunpack.c.l.b16 %v650
        %v684 = vpack.c.b16 %v669, %v668
        %v685 = vpack.c.b16 %v671, %v670
        %v686 = vpack.c.b16 %v673, %v672
        %v687 = vpack.c.b16 %v675, %v674
        %v688 = vpack.c.b16 %v677, %v676
        %v689 = vpack.c.b16 %v679, %v678
        %v690 = vpack.c.b16 %v681, %v680
        %v691 = vpack.c.b16 %v683, %v682
        %700 = vmatpush.bf16.msra.mxu0 %v691
        %701 = vmatpush.bf16.msra.mxu0 %v690
        %702 = vmatpush.bf16.msra.mxu0 %v689
        %703 = vmatpush.bf16.msra.mxu0 %v688
        %704 = vmatpush.bf16.msra.mxu0 %v687
        %705 = vmatpush.bf16.msra.mxu0 %v686
        %706 = vmatpush.bf16.msra.mxu0 %v685
        %707 = vmatpush.bf16.msra.mxu0 %v684
        %708 = vmatmul.bf16.gmra.mxu0 %v632
        %v709 = vpop.f32.mrf.mxu0
        %v710 = vadd.f32 %v651, %v709
        %v711 = vpop.f32.mrf.mxu0
        %v712 = vadd.f32 %v651, %v711
        %713 = vmatmul.bf16.gmra.mxu0 %v633
        %v714 = vpop.f32.mrf.mxu0
        %v715 = vadd.f32 %v651, %v714
        %v716 = vpop.f32.mrf.mxu0
        %v717 = vadd.f32 %v651, %v716
        %718 = vmatmul.bf16.gmra.mxu0 %v634
        %v719 = vpop.f32.mrf.mxu0
        %v720 = vadd.f32 %v651, %v719
        %v721 = vpop.f32.mrf.mxu0
        %v722 = vadd.f32 %v651, %v721
        %723 = vdwg.mxu0
        %v724 = vmax.f32 %v710, 0.0
        %v725 = vmax.f32 %v712, 0.0
        %v726 = vmax.f32 %v715, 0.0
        %v727 = vmax.f32 %v717, 0.0
        %v728 = vmax.f32 %v720, 0.0
        %v729 = vmax.f32 %v722, 0.0
        %v730 = vpack.c.bf16 %v725, %v724
        %v731 = vpack.c.bf16 %v727, %v726
        %v732 = vpack.c.bf16 %v729, %v728
        %v733 = vld [vmem:[#allocation10] sm:$0xff]
        %v734 = vld [vmem:[#allocation10 + $0x8] sm:$0xff]
        %v735 = vld [vmem:[#allocation10 + $0x10] sm:$0xff]
        %v736 = vld [vmem:[#allocation10 + $0x18] sm:$0xff]
        %v737 = vld [vmem:[#allocation10 + $0x20] sm:$0xff]
        %v738 = vld [vmem:[#allocation10 + $0x28] sm:$0xff]
        %v739 = vld [vmem:[#allocation10 + $0x30] sm:$0xff]
        %v740 = vld [vmem:[#allocation10 + $0x38] sm:$0xff]
        %v741 = vld [vmem:[#allocation10 + $0x40] sm:$0xff]
        %v742 = vld [vmem:[#allocation10 + $0x48] sm:$0xff]
        %v743 = vld [vmem:[#allocation10 + $0x50] sm:$0xff]
        %v744 = vld [vmem:[#allocation10 + $0x58] sm:$0xff]
        %v745 = vld [vmem:[#allocation10 + $0x60] sm:$0xff]
        %v746 = vld [vmem:[#allocation10 + $0x68] sm:$0xff]
        %v747 = vld [vmem:[#allocation10 + $0x70] sm:$0xff]
        %v748 = vld [vmem:[#allocation10 + $0x78] sm:$0xff]
        %v749 = vperm.slane %v511, 2
        %v750 = vperm.slane %v512, 2
        %v767 = vunpack.c.l.b16 %v733
        %v768 = vunpack.c.h.b16 %v733
        %v769 = vunpack.c.l.b16 %v734
        %v770 = vunpack.c.h.b16 %v734
        %v771 = vunpack.c.l.b16 %v735
        %v772 = vunpack.c.h.b16 %v735
        %v773 = vunpack.c.l.b16 %v736
        %v774 = vunpack.c.h.b16 %v736
        %v775 = vunpack.c.l.b16 %v737
        %v776 = vunpack.c.h.b16 %v737
        %v777 = vunpack.c.l.b16 %v738
        %v778 = vunpack.c.h.b16 %v738
        %v779 = vunpack.c.l.b16 %v739
        %v780 = vunpack.c.h.b16 %v739
        %v781 = vunpack.c.l.b16 %v740
        %v782 = vunpack.c.h.b16 %v740
        %v783 = vunpack.c.l.b16 %v741
        %v784 = vunpack.c.h.b16 %v741
        %v785 = vunpack.c.l.b16 %v742
        %v786 = vunpack.c.h.b16 %v742
        %v787 = vunpack.c.l.b16 %v743
        %v788 = vunpack.c.h.b16 %v743
        %v789 = vunpack.c.l.b16 %v744
        %v790 = vunpack.c.h.b16 %v744
        %v791 = vunpack.c.l.b16 %v745
        %v792 = vunpack.c.h.b16 %v745
        %v793 = vunpack.c.l.b16 %v746
        %v794 = vunpack.c.h.b16 %v746
        %v795 = vunpack.c.l.b16 %v747
        %v796 = vunpack.c.h.b16 %v747
        %v797 = vunpack.c.l.b16 %v748
        %v798 = vunpack.c.h.b16 %v748
        %v799 = vpack.c.b16 %v769, %v767
        %v800 = vpack.c.b16 %v770, %v768
        %v801 = vpack.c.b16 %v773, %v771
        %v802 = vpack.c.b16 %v774, %v772
        %v803 = vpack.c.b16 %v777, %v775
        %v804 = vpack.c.b16 %v778, %v776
        %v805 = vpack.c.b16 %v781, %v779
        %v806 = vpack.c.b16 %v782, %v780
        %v807 = vpack.c.b16 %v785, %v783
        %v808 = vpack.c.b16 %v786, %v784
        %v809 = vpack.c.b16 %v789, %v787
        %v810 = vpack.c.b16 %v790, %v788
        %v811 = vpack.c.b16 %v793, %v791
        %v812 = vpack.c.b16 %v794, %v792
        %v813 = vpack.c.b16 %v797, %v795
        %v814 = vpack.c.b16 %v798, %v796
        %831 = vmatpush.bf16.msra.mxu0 %v813
        %832 = vmatpush.bf16.msra.mxu0 %v811
        %833 = vmatpush.bf16.msra.mxu0 %v809
        %834 = vmatpush.bf16.msra.mxu0 %v807
        %835 = vmatpush.bf16.msra.mxu0 %v805
        %836 = vmatpush.bf16.msra.mxu0 %v803
        %837 = vmatpush.bf16.msra.mxu0 %v801
        %838 = vmatpush.bf16.msra.mxu0 %v799
        %839 = vmatmul.bf16.gmra.mxu0 %v730
        %v840 = vpop.f32.mrf.mxu0
        %v841 = vadd.f32 %v749, %v840
        %v842 = vpop.f32.mrf.mxu0
        %v843 = vadd.f32 %v749, %v842
        %844 = vmatmul.bf16.gmra.mxu0 %v731
        %v845 = vpop.f32.mrf.mxu0
        %v846 = vadd.f32 %v749, %v845
        %v847 = vpop.f32.mrf.mxu0
        %v848 = vadd.f32 %v749, %v847
        %849 = vmatmul.bf16.gmra.mxu0 %v732
        %v850 = vpop.f32.mrf.mxu0
        %v851 = vadd.f32 %v749, %v850
        %v852 = vpop.f32.mrf.mxu0
        %v853 = vadd.f32 %v749, %v852
        %854 = vdwg.mxu0
        %855 = vmatpush.bf16.msra.mxu0 %v814
        %856 = vmatpush.bf16.msra.mxu0 %v812
        %857 = vmatpush.bf16.msra.mxu0 %v810
        %858 = vmatpush.bf16.msra.mxu0 %v808
        %859 = vmatpush.bf16.msra.mxu0 %v806
        %860 = vmatpush.bf16.msra.mxu0 %v804
        %861 = vmatpush.bf16.msra.mxu0 %v802
        %862 = vmatpush.bf16.msra.mxu0 %v800
        %863 = vmatmul.bf16.gmra.mxu0 %v730
        %v864 = vpop.f32.mrf.mxu0
        %v865 = vadd.f32 %v750, %v864
        %v866 = vpop.f32.mrf.mxu0
        %v867 = vadd.f32 %v750, %v866
        %868 = vmatmul.bf16.gmra.mxu0 %v731
        %v869 = vpop.f32.mrf.mxu0
        %v870 = vadd.f32 %v750, %v869
        %v871 = vpop.f32.mrf.mxu0
        %v872 = vadd.f32 %v750, %v871
        %873 = vmatmul.bf16.gmra.mxu0 %v732
        %v874 = vpop.f32.mrf.mxu0
        %v875 = vadd.f32 %v750, %v874
        %v876 = vpop.f32.mrf.mxu0
        %v877 = vadd.f32 %v750, %v876
        %878 = vdwg.mxu0
        %v879 = vld [vmem:[%s432] sm:$0xff]
        %v880 = vld [vmem:[%s432 + $0x8] sm:$0xff]
        %v881 = vld [vmem:[%s432 + $0x10] sm:$0xff]
        %v882 = vld [vmem:[%s432 + $0x18] sm:$0xff]
        %v883 = vld [vmem:[%s432 + $0x20] sm:$0xff]
        %v884 = vld [vmem:[%s432 + $0x28] sm:$0xff]
        %v885 = vmul.f32 %v865, 0.5
        %v886 = vmul.f32 %v867, 0.5
        %v887 = vmul.f32 %v870, 0.5
        %v888 = vmul.f32 %v872, 0.5
        %v889 = vmul.f32 %v875, 0.5
        %v890 = vmul.f32 %v877, 0.5
        %v891 = vmul.f32 %v885, 1.442695
        %v892 = vpow.pop %v891
        %v893 = vmul.f32 %v886, 1.442695
        %v894 = vpow.pop %v893
        %v895 = vmul.f32 %v887, 1.442695
        %v896 = vpow.pop %v895
        %v897 = vmul.f32 %v888, 1.442695
        %v898 = vpow.pop %v897
        %v899 = vmul.f32 %v889, 1.442695
        %v900 = vpow.pop %v899
        %v901 = vmul.f32 %v890, 1.442695
        %v902 = vpow.pop %v901
        %v903 = vmul.f32 %v879, %v892
        %v904 = vmul.f32 %v880, %v894
        %v905 = vmul.f32 %v881, %v896
        %v906 = vmul.f32 %v882, %v898
        %v907 = vmul.f32 %v883, %v900
        %v908 = vmul.f32 %v884, %v902
        %v909 = vadd.f32 %v841, %v903
        %v910 = vadd.f32 %v843, %v904
        %v911 = vadd.f32 %v846, %v905
        %v912 = vadd.f32 %v848, %v906
        %v913 = vadd.f32 %v851, %v907
        %v914 = vadd.f32 %v853, %v908
        %v915 = vpack.c.bf16 %v910, %v909
        %v916 = vpack.c.bf16 %v912, %v911
        %v917 = vpack.c.bf16 %v914, %v913
        %v918 = vld [vmem:[#allocation11] sm:$0xf]
        %v919 = vld [vmem:[#allocation11 + $0x4] sm:$0xf]
        %v920 = vld [vmem:[#allocation11 + $0x8] sm:$0xf]
        %v921 = vld [vmem:[#allocation11 + $0xc] sm:$0xf]
        %v922 = vld [vmem:[#allocation11 + $0x10] sm:$0xf]
        %v923 = vld [vmem:[#allocation11 + $0x14] sm:$0xf]
        %v924 = vld [vmem:[#allocation11 + $0x18] sm:$0xf]
        %v925 = vld [vmem:[#allocation11 + $0x1c] sm:$0xf]
        %v926 = vld [vmem:[#allocation11 + $0x20] sm:$0xf]
        %v927 = vld [vmem:[#allocation11 + $0x24] sm:$0xf]
        %v928 = vld [vmem:[#allocation11 + $0x28] sm:$0xf]
        %v929 = vld [vmem:[#allocation11 + $0x2c] sm:$0xf]
        %v930 = vld [vmem:[#allocation11 + $0x30] sm:$0xf]
        %v931 = vld [vmem:[#allocation11 + $0x34] sm:$0xf]
        %v932 = vld [vmem:[#allocation11 + $0x38] sm:$0xf]
        %v933 = vld [vmem:[#allocation11 + $0x3c] sm:$0xf]
        %v934 = vperm.slane %v511, 3
        %v951 = vunpack.c.l.b16 %v918
        %v952 = vunpack.c.l.b16 %v919
        %v953 = vunpack.c.l.b16 %v920
        %v954 = vunpack.c.l.b16 %v921
        %v955 = vunpack.c.l.b16 %v922
        %v956 = vunpack.c.l.b16 %v923
        %v957 = vunpack.c.l.b16 %v924
        %v958 = vunpack.c.l.b16 %v925
        %v959 = vunpack.c.l.b16 %v926
        %v960 = vunpack.c.l.b16 %v927
        %v961 = vunpack.c.l.b16 %v928
        %v962 = vunpack.c.l.b16 %v929
        %v963 = vunpack.c.l.b16 %v930
        %v964 = vunpack.c.l.b16 %v931
        %v965 = vunpack.c.l.b16 %v932
        %v966 = vunpack.c.l.b16 %v933
        %v967 = vpack.c.b16 %v952, %v951
        %v968 = vpack.c.b16 %v954, %v953
        %v969 = vpack.c.b16 %v956, %v955
        %v970 = vpack.c.b16 %v958, %v957
        %v971 = vpack.c.b16 %v960, %v959
        %v972 = vpack.c.b16 %v962, %v961
        %v973 = vpack.c.b16 %v964, %v963
        %v974 = vpack.c.b16 %v966, %v965
        %983 = vmatpush.bf16.msra.mxu0 %v974
        %984 = vmatpush.bf16.msra.mxu0 %v973
        %985 = vmatpush.bf16.msra.mxu0 %v972
        %986 = vmatpush.bf16.msra.mxu0 %v971
        %987 = vmatpush.bf16.msra.mxu0 %v970
        %988 = vmatpush.bf16.msra.mxu0 %v969
        %989 = vmatpush.bf16.msra.mxu0 %v968
        %990 = vmatpush.bf16.msra.mxu0 %v967
        %991 = vmatmul.bf16.gmra.mxu0 %v915
        %v992 = vpop.f32.mrf.mxu0
        %v993 = vadd.f32 %v934, %v992
        %v994 = vpop.f32.mrf.mxu0
        %v995 = vadd.f32 %v934, %v994
        %996 = vmatmul.bf16.gmra.mxu0 %v916
        %v997 = vpop.f32.mrf.mxu0
        %v998 = vadd.f32 %v934, %v997
        %v999 = vpop.f32.mrf.mxu0
        %v1000 = vadd.f32 %v934, %v999
        %1001 = vmatmul.bf16.gmra.mxu0 %v917
        %v1002 = vpop.f32.mrf.mxu0
        %v1003 = vadd.f32 %v934, %v1002
        %v1004 = vpop.f32.mrf.mxu0
        %v1005 = vadd.f32 %v934, %v1004
        %1006 = vdwg.mxu0
        %v1007 = vmax.f32 %v993, 0.0
        %v1008 = vmax.f32 %v995, 0.0
        %v1009 = vmax.f32 %v998, 0.0
        %v1010 = vmax.f32 %v1000, 0.0
        %v1011 = vmax.f32 %v1003, 0.0
        %v1012 = vmax.f32 %v1005, 0.0
        %v1013 = vpack.c.bf16 %v1008, %v1007
        %v1014 = vpack.c.bf16 %v1010, %v1009
        %v1015 = vpack.c.bf16 %v1012, %v1011
        %v1016 = vld [vmem:[#allocation13] sm:$0xf]
        %v1017 = vld [vmem:[#allocation13 + $0x4] sm:$0xf]
        %v1018 = vld [vmem:[#allocation13 + $0x8] sm:$0xf]
        %v1019 = vld [vmem:[#allocation13 + $0xc] sm:$0xf]
        %v1020 = vld [vmem:[#allocation13 + $0x10] sm:$0xf]
        %v1021 = vld [vmem:[#allocation13 + $0x14] sm:$0xf]
        %v1022 = vld [vmem:[#allocation13 + $0x18] sm:$0xf]
        %v1023 = vld [vmem:[#allocation13 + $0x1c] sm:$0xf]
        %v1024 = vld [vmem:[#allocation13 + $0x20] sm:$0xf]
        %v1025 = vld [vmem:[#allocation13 + $0x24] sm:$0xf]
        %v1026 = vld [vmem:[#allocation13 + $0x28] sm:$0xf]
        %v1027 = vld [vmem:[#allocation13 + $0x2c] sm:$0xf]
        %v1028 = vld [vmem:[#allocation13 + $0x30] sm:$0xf]
        %v1029 = vld [vmem:[#allocation13 + $0x34] sm:$0xf]
        %v1030 = vld [vmem:[#allocation13 + $0x38] sm:$0xf]
        %v1031 = vld [vmem:[#allocation13 + $0x3c] sm:$0xf]
        %v1032 = vperm.slane %v511, 4
        %v1049 = vunpack.c.l.b16 %v1016
        %v1050 = vunpack.c.l.b16 %v1017
        %v1051 = vunpack.c.l.b16 %v1018
        %v1052 = vunpack.c.l.b16 %v1019
        %v1053 = vunpack.c.l.b16 %v1020
        %v1054 = vunpack.c.l.b16 %v1021
        %v1055 = vunpack.c.l.b16 %v1022
        %v1056 = vunpack.c.l.b16 %v1023
        %v1057 = vunpack.c.l.b16 %v1024
        %v1058 = vunpack.c.l.b16 %v1025
        %v1059 = vunpack.c.l.b16 %v1026
        %v1060 = vunpack.c.l.b16 %v1027
        %v1061 = vunpack.c.l.b16 %v1028
        %v1062 = vunpack.c.l.b16 %v1029
        %v1063 = vunpack.c.l.b16 %v1030
        %v1064 = vunpack.c.l.b16 %v1031
        %v1065 = vpack.c.b16 %v1050, %v1049
        %v1066 = vpack.c.b16 %v1052, %v1051
        %v1067 = vpack.c.b16 %v1054, %v1053
        %v1068 = vpack.c.b16 %v1056, %v1055
        %v1069 = vpack.c.b16 %v1058, %v1057
        %v1070 = vpack.c.b16 %v1060, %v1059
        %v1071 = vpack.c.b16 %v1062, %v1061
        %v1072 = vpack.c.b16 %v1064, %v1063
        %1081 = vmatpush.bf16.msra.mxu0 %v1072
        %1082 = vmatpush.bf16.msra.mxu0 %v1071
        %1083 = vmatpush.bf16.msra.mxu0 %v1070
        %1084 = vmatpush.bf16.msra.mxu0 %v1069
        %1085 = vmatpush.bf16.msra.mxu0 %v1068
        %1086 = vmatpush.bf16.msra.mxu0 %v1067
        %1087 = vmatpush.bf16.msra.mxu0 %v1066
        %1088 = vmatpush.bf16.msra.mxu0 %v1065
        %1089 = vmatmul.bf16.gmra.mxu0 %v1013
        %v1090 = vpop.f32.mrf.mxu0
        %v1091 = vadd.f32 %v1032, %v1090
        %v1092 = vpop.f32.mrf.mxu0
        %v1093 = vadd.f32 %v1032, %v1092
        %1094 = vmatmul.bf16.gmra.mxu0 %v1014
        %v1095 = vpop.f32.mrf.mxu0
        %v1096 = vadd.f32 %v1032, %v1095
        %v1097 = vpop.f32.mrf.mxu0
        %v1098 = vadd.f32 %v1032, %v1097
        %1099 = vmatmul.bf16.gmra.mxu0 %v1015
        %v1100 = vpop.f32.mrf.mxu0
        %v1101 = vadd.f32 %v1032, %v1100
        %v1102 = vpop.f32.mrf.mxu0
        %v1103 = vadd.f32 %v1032, %v1102
        %1104 = vdwg.mxu0
        %v1105 = vmax.f32 %v1091, 0.0
        %v1106 = vmax.f32 %v1093, 0.0
        %v1107 = vmax.f32 %v1096, 0.0
        %v1108 = vmax.f32 %v1098, 0.0
        %v1109 = vmax.f32 %v1101, 0.0
        %v1110 = vmax.f32 %v1103, 0.0
        %v1111 = vpack.c.bf16 %v1106, %v1105
        %v1112 = vpack.c.bf16 %v1108, %v1107
        %v1113 = vpack.c.bf16 %v1110, %v1109
        %v1114 = vld [vmem:[#allocation14] sm:$0xf]
        %v1115 = vld [vmem:[#allocation14 + $0x4] sm:$0xf]
        %v1116 = vld [vmem:[#allocation14 + $0x8] sm:$0xf]
        %v1117 = vld [vmem:[#allocation14 + $0xc] sm:$0xf]
        %v1118 = vld [vmem:[#allocation14 + $0x10] sm:$0xf]
        %v1119 = vld [vmem:[#allocation14 + $0x14] sm:$0xf]
        %v1120 = vld [vmem:[#allocation14 + $0x18] sm:$0xf]
        %v1121 = vld [vmem:[#allocation14 + $0x1c] sm:$0xf]
        %v1122 = vld [vmem:[#allocation14 + $0x20] sm:$0xf]
        %v1123 = vld [vmem:[#allocation14 + $0x24] sm:$0xf]
        %v1124 = vld [vmem:[#allocation14 + $0x28] sm:$0xf]
        %v1125 = vld [vmem:[#allocation14 + $0x2c] sm:$0xf]
        %v1126 = vld [vmem:[#allocation14 + $0x30] sm:$0xf]
        %v1127 = vld [vmem:[#allocation14 + $0x34] sm:$0xf]
        %v1128 = vld [vmem:[#allocation14 + $0x38] sm:$0xf]
        %v1129 = vld [vmem:[#allocation14 + $0x3c] sm:$0xf]
        %v1130 = vperm.slane %v511, 5
        %v1147 = vunpack.c.l.b16 %v1114
        %v1148 = vunpack.c.l.b16 %v1115
        %v1149 = vunpack.c.l.b16 %v1116
        %v1150 = vunpack.c.l.b16 %v1117
        %v1151 = vunpack.c.l.b16 %v1118
        %v1152 = vunpack.c.l.b16 %v1119
        %v1153 = vunpack.c.l.b16 %v1120
        %v1154 = vunpack.c.l.b16 %v1121
        %v1155 = vunpack.c.l.b16 %v1122
        %v1156 = vunpack.c.l.b16 %v1123
        %v1157 = vunpack.c.l.b16 %v1124
        %v1158 = vunpack.c.l.b16 %v1125
        %v1159 = vunpack.c.l.b16 %v1126
        %v1160 = vunpack.c.l.b16 %v1127
        %v1161 = vunpack.c.l.b16 %v1128
        %v1162 = vunpack.c.l.b16 %v1129
        %v1163 = vpack.c.b16 %v1148, %v1147
        %v1164 = vpack.c.b16 %v1150, %v1149
        %v1165 = vpack.c.b16 %v1152, %v1151
        %v1166 = vpack.c.b16 %v1154, %v1153
        %v1167 = vpack.c.b16 %v1156, %v1155
        %v1168 = vpack.c.b16 %v1158, %v1157
        %v1169 = vpack.c.b16 %v1160, %v1159
        %v1170 = vpack.c.b16 %v1162, %v1161
        %1179 = vmatpush.bf16.msra.mxu0 %v1170
        %1180 = vmatpush.bf16.msra.mxu0 %v1169
        %1181 = vmatpush.bf16.msra.mxu0 %v1168
        %1182 = vmatpush.bf16.msra.mxu0 %v1167
        %1183 = vmatpush.bf16.msra.mxu0 %v1166
        %1184 = vmatpush.bf16.msra.mxu0 %v1165
        %1185 = vmatpush.bf16.msra.mxu0 %v1164
        %1186 = vmatpush.bf16.msra.mxu0 %v1163
        %1187 = vmatmul.bf16.gmra.mxu0 %v1111
        %v1188 = vpop.f32.mrf.mxu0
        %v1189 = vadd.f32 %v1130, %v1188
        %v1190 = vpop.f32.mrf.mxu0
        %v1191 = vadd.f32 %v1130, %v1190
        %1192 = vmatmul.bf16.gmra.mxu0 %v1112
        %v1193 = vpop.f32.mrf.mxu0
        %v1194 = vadd.f32 %v1130, %v1193
        %v1195 = vpop.f32.mrf.mxu0
        %v1196 = vadd.f32 %v1130, %v1195
        %1197 = vmatmul.bf16.gmra.mxu0 %v1113
        %v1198 = vpop.f32.mrf.mxu0
        %v1199 = vadd.f32 %v1130, %v1198
        %v1200 = vpop.f32.mrf.mxu0
        %v1201 = vadd.f32 %v1130, %v1200
        %1202 = vdwg.mxu0
        %1203 = vst [vmem:[%s507] sm:$0xff] %v1189
        %1204 = vst [vmem:[%s507 + $0x18] sm:$0xff] %v1191
        %1205 = vst [vmem:[%s507 + $0x30] sm:$0xff] %v1194
        %1206 = vst [vmem:[%s507 + $0x48] sm:$0xff] %v1196
        %1207 = vst [vmem:[%s507 + $0x60] sm:$0xff] %v1199
        %1208 = vst [vmem:[%s507 + $0x78] sm:$0xff] %v1201
        %1209 = vst [vmem:[%s507 + $0x8] sm:$0xff] %v841
        %1210 = vst [vmem:[%s507 + $0x10] sm:$0xff] %v865
        %1211 = vst [vmem:[%s507 + $0x20] sm:$0xff] %v843
        %1212 = vst [vmem:[%s507 + $0x28] sm:$0xff] %v867
        %1213 = vst [vmem:[%s507 + $0x38] sm:$0xff] %v846
        %1214 = vst [vmem:[%s507 + $0x40] sm:$0xff] %v870
        %1215 = vst [vmem:[%s507 + $0x50] sm:$0xff] %v848
        %1216 = vst [vmem:[%s507 + $0x58] sm:$0xff] %v872
        %1217 = vst [vmem:[%s507 + $0x68] sm:$0xff] %v851
        %1218 = vst [vmem:[%s507 + $0x70] sm:$0xff] %v875
        %1219 = vst [vmem:[%s507 + $0x80] sm:$0xff] %v853
        %1220 = vst [vmem:[%s507 + $0x88] sm:$0xff] %v877
        %s1221 = sand.u32 %s239, 1
        %s1222 = scalar_lea.sflag [#allocation4], %s1221
        %s1223 = sand.u32 %s239, 1
        %s1224 = smul.addr %s1223, 144
        %s1225 = scalar_lea.vmem [#allocation17], %s1224
        // Predicated region
        $region93: #{tpu_custom_call.1} parent=55 // pred_check
          %p1226 = pneg %p249
        $region94: #{tpu_custom_call.1} parent=55 // pred_check_branch
          %1228 = sbr.rel (%p1226) target = $region96
        $region95: #{tpu_custom_call.1} parent=55 // pred_region
          %s1229 = smul.u32 6, %s32
          %1231 = vsyncadd %s1222, 0
          %s1232 = smul.addr %s1229, 3
          %s1233 = smul.addr %s1232, 8
          %s1234 = scalar_lea.hbm %s9, %s1233
          %s1235 = sshll.u32 %s1225, 4
          %s1236 = int_to_ptr.vmem [resolvable:$true] %s1235
          %s1237 = sshll.u32 %s1234, 4
          %s1238 = int_to_ptr.hbm [resolvable:$true] %s1237
          %1243 = dma.vmem_to_hbm [thread:$0]  %s1236, 2304, %s1238, %s1222, 384, 384, 24
        $region96: #{tpu_custom_call.1} parent=55 // pred_fallthru
          _
      $region56: #{tpu_custom_call.1} parent=5 // pred_fallthru
        _
      %p1244 = scmp.le.s32.totalorder 2, %s27
      // Predicated region
      $region97: #{tpu_custom_call.1} parent=5 // pred_check
        %p1245 = pneg %p1244
      $region98: #{tpu_custom_call.1} parent=5 // pred_check_branch
        %1247 = sbr.rel (%p1245) target = $region100
      $region99: #{tpu_custom_call.1} parent=5 // pred_region
        %s1248 = ssub.s32 %s27, 2
        // Predicated region
        $region101: #{tpu_custom_call.1} parent=99 // pred_check
          %p1249 = pneg %p255
        $region102: #{tpu_custom_call.1} parent=99 // pred_check_branch
          %1251 = sbr.rel (%p1249) target = $region104
        $region103: #{tpu_custom_call.1} parent=99 // pred_region
          %s1252 = sand.u32 %s240, 1
          %s1253 = scalar_lea.sflag [#allocation4], %s1252
          %s1254 = sand.u32 %s240, 1
          %s1255 = smul.addr %s1254, 144
          %s1256 = scalar_lea.vmem [#allocation17], %s1255
          %1258 = dma.done %s1253, 2304
        $region104: #{tpu_custom_call.1} parent=99 // pred_fallthru
          _
      $region100: #{tpu_custom_call.1} parent=5 // pred_fallthru
        _
    $region6: #{tpu_custom_call.1} parent=1 // loop_footer
      %s31 = sadd.s32 1, %s27
    $region7: #{tpu_custom_call.1} parent=1 // loop_footer_branch
      %26 = sbr.rel target = $region3
    $region8: #{tpu_custom_call.1} parent=1 // loop_exit
      _
    %1259 = vsyncpa [#allocation3], 1
    %s1260 = scalar_lea.sflag [#allocation3], 1
    %1261 = vsyncpa %s1260, 1
    %1262 = vsyncpa [#allocation6], 1
    %s1263 = scalar_lea.sflag [#allocation6], 1
    %1264 = vsyncpa %s1263, 1
    %1265 = vsyncpa [#allocation9], 1
    %1266 = vsyncpa [#allocation12], 1
    %1267 = vsyncpa [#allocation15], 1
    %1268 = vsyncpa [#allocation4], 1
    %s1269 = scalar_lea.sflag [#allocation4], 1
    %1270 = vsyncpa %s1269, 1

</llo_original>
